<compile_context>
chip_gen: v7x
topology: tpu7x:2x2x1
jax: 0.10.0
libtpu: 0.0.40
codegen_flags: <defaults>
</compile_context>

<pallas_src>
import functools
import math

import jax
import jax.numpy as jnp
from jax.experimental import pallas as pl
from jax.experimental.pallas import tpu as pltpu

VOCAB = 100
MAX_POS = 64
HIDDEN = 32
N_LAYERS = 2
N_HEADS = 4
HEAD_DIM = HIDDEN // N_HEADS
FFN = 64
N_LABELS = 3
PAD_ID = 1
LN_EPS = 1e-5
LANE = 128  # lane-dense width for the padded classifier output


def _vmem_spec():
    return pl.BlockSpec(memory_space=pltpu.MemorySpace.VMEM)


# ---------------------------- fused Pallas kernel ----------------------------

def _phobert_fused_kernel(
    emb_ref, row_bid_ref, col_bid_ref, key_valid_ref,
    emb_ln_g_ref, emb_ln_b_ref,
    qkv_w_ref, qkv_b_ref, o_w_ref, o_b_ref,
    attn_ln_g_ref, attn_ln_b_ref,
    ffn_in_w_ref, ffn_in_b_ref, ffn_out_w_ref, ffn_out_b_ref,
    ffn_ln_g_ref, ffn_ln_b_ref, cls_w_ref, cls_b_ref,
    out_ref, *, n_layers, n_heads, head_dim, hidden, batch, seq,
):
    """Whole PhoBERT encoder + CLS classifier in a single kernel invocation."""

    def layer_norm(x, g, b):  # f32 math throughout
        mu = jnp.mean(x, axis=-1, keepdims=True)
        var = jnp.mean(jnp.square(x - mu), axis=-1, keepdims=True)
        return (x - mu) * jax.lax.rsqrt(var + LN_EPS) * g + b

    # Additive attention bias built in-kernel from O(B*S) inputs:
    # -1e9 wherever the key is in another sequence or is a padding token.
    same_seq = row_bid_ref[...] == col_bid_ref[...]            # (BS,1)==(1,BS) -> (BS,BS)
    key_valid = key_valid_ref[...] > 0.5                       # (1, BS)
    bias = jnp.where(jnp.logical_and(same_seq, key_valid), 0.0, -1e9)

    h = layer_norm(emb_ref[...].astype(jnp.float32),
                   emb_ln_g_ref[...], emb_ln_b_ref[...])       # (BS, H) f32

    for layer in range(n_layers):                              # statically unrolled
        # ---- self-attention: fused QKV projection (one MXU push), per-head
        #      softmax, single head-merge output projection ----
        h_bf = h.astype(jnp.bfloat16)                          # hoisted: one cast
        qkv = jnp.dot(h_bf, qkv_w_ref[layer],
                      preferred_element_type=jnp.float32) + qkv_b_ref[layer]  # (BS, 3H)
        qkv_bf = qkv.astype(jnp.bfloat16)                      # one cast for all heads

        ctx_heads = []
        for hd in range(n_heads):
            q0 = hd * head_dim
            qh = qkv_bf[:, q0:q0 + head_dim]                           # scale pre-folded
            kh = qkv_bf[:, hidden + q0:hidden + q0 + head_dim]
            vh = qkv_bf[:, 2 * hidden + q0:2 * hidden + q0 + head_dim]
            # scores = qh @ kh^T  (rhs-contracted dot_general; no transpose op)
            s = jax.lax.dot_general(
                qh, kh, dimension_numbers=(((1,), (1,)), ((), ())),
                preferred_element_type=jnp.float32) + bias             # (BS, BS)
            m = jnp.max(s, axis=-1, keepdims=True)
            p = jnp.exp(s - m)
            p = p * pl.reciprocal(jnp.sum(p, axis=-1, keepdims=True), approx=True)
            ctx_heads.append(
                jnp.dot(p.astype(jnp.bfloat16), vh,
                        preferred_element_type=jnp.float32))           # (BS, Dh)
        ctx = jnp.concatenate(ctx_heads, axis=-1).astype(jnp.bfloat16)  # (BS, H)
        attn_out = jnp.dot(ctx, o_w_ref[layer],
                           preferred_element_type=jnp.float32) + o_b_ref[layer]
        h = layer_norm(attn_out + h, attn_ln_g_ref[layer], attn_ln_b_ref[layer])

        # ---- feed-forward: matmul + GELU + matmul + residual + LN, fused ----
        f = jnp.dot(h.astype(jnp.bfloat16), ffn_in_w_ref[layer],
                    preferred_element_type=jnp.float32) + ffn_in_b_ref[layer]
        # TODO(synk): HF PhoBERT uses exact erf-based GELU; tanh approximation kept
        # for safe TPU lowering.
        f = jax.nn.gelu(f, approximate=True)
        f = jnp.dot(f.astype(jnp.bfloat16), ffn_out_w_ref[layer],
                    preferred_element_type=jnp.float32) + ffn_out_b_ref[layer]
        h = layer_norm(f + h, ffn_ln_g_ref[layer], ffn_ln_b_ref[layer])

    # ---- classifier on the B CLS (<s>) rows only; lane-dense padded store ----
    cls_rows = [h[b * seq:b * seq + 1, :] for b in range(batch)]
    cls_h = jnp.concatenate(cls_rows, axis=0).astype(jnp.bfloat16)      # (B, H)
    out_ref[...] = (jnp.dot(cls_h, cls_w_ref[...],
                            preferred_element_type=jnp.float32)
                    + cls_b_ref[...]).astype(out_ref.dtype)             # (B, 128)


# ---------------------------- parameters ----------------------------

def init_params(key):
    keys = iter(jax.random.split(key, 64))

    def nrm(shape, std=0.02):
        return std * jax.random.normal(next(keys), shape, dtype=jnp.float32)

    # HF RoBERTa zeroes the padding_idx rows of the embedding tables.
    word_emb = nrm((VOCAB, HIDDEN)).at[PAD_ID].set(0.0)
    pos_emb = nrm((MAX_POS, HIDDEN)).at[PAD_ID].set(0.0)

    # Fused QKV weights with 1/sqrt(head_dim) folded into the Q columns.
    scale = 1.0 / math.sqrt(HEAD_DIM)
    q_w = nrm((N_LAYERS, HIDDEN, HIDDEN)) * scale
    k_w = nrm((N_LAYERS, HIDDEN, HIDDEN))
    v_w = nrm((N_LAYERS, HIDDEN, HIDDEN))
    qkv_w = jnp.concatenate([q_w, k_w, v_w], axis=-1)            # (L, H, 3H)
    qkv_b = jnp.zeros((N_LAYERS, 1, 3 * HIDDEN), jnp.float32)    # Q part pre-scaled (zero)

    # Classifier padded to 128 lanes so the final store is unmasked/lane-dense.
    cls_w = nrm((HIDDEN, N_LABELS))
    cls_w_pad = jnp.zeros((HIDDEN, LANE), jnp.float32).at[:, :N_LABELS].set(cls_w)
    cls_b_pad = jnp.zeros((1, LANE), jnp.float32)

    bf16 = lambda a: a.astype(jnp.bfloat16)   # MXU operands stored bf16 at init time

    return {
        "word_emb": word_emb,
        "pos_emb": pos_emb,
        "type_emb": nrm((1, HIDDEN)),
        "emb_ln_g": jnp.ones((1, HIDDEN), jnp.float32),
        "emb_ln_b": jnp.zeros((1, HIDDEN), jnp.float32),
        "qkv_w": bf16(qkv_w),
        "qkv_b": qkv_b,
        "o_w": bf16(nrm((N_LAYERS, HIDDEN, HIDDEN))),
        "o_b": jnp.zeros((N_LAYERS, 1, HIDDEN), jnp.float32),
        "attn_ln_g": jnp.ones((N_LAYERS, 1, HIDDEN), jnp.float32),
        "attn_ln_b": jnp.zeros((N_LAYERS, 1, HIDDEN), jnp.float32),
        "ffn_in_w": bf16(nrm((N_LAYERS, HIDDEN, FFN))),
        "ffn_in_b": jnp.zeros((N_LAYERS, 1, FFN), jnp.float32),
        "ffn_out_w": bf16(nrm((N_LAYERS, FFN, HIDDEN))),
        "ffn_out_b": jnp.zeros((N_LAYERS, 1, HIDDEN), jnp.float32),
        "ffn_ln_g": jnp.ones((N_LAYERS, 1, HIDDEN), jnp.float32),
        "ffn_ln_b": jnp.zeros((N_LAYERS, 1, HIDDEN), jnp.float32),
        "cls_w": bf16(cls_w_pad),
        "cls_b": cls_b_pad,
    }


# ---------------------------- forward pass ----------------------------

def phobert_classifier_forward(params, input_ids, attention_mask):
    B, S = input_ids.shape
    mask_i = attention_mask.astype(jnp.int32)

    # --- embeddings (gather is JAX glue; LayerNorm runs inside the fused kernel) ---
    # RoBERTa-style position ids: padding_idx + running count of non-pad tokens.
    # TODO(synk): HF derives this from (input_ids != pad_id); equivalent when the
    # attention_mask exactly marks padding tokens (true here).
    pos_ids = jnp.cumsum(mask_i, axis=1) * mask_i + PAD_ID
    word_e = jnp.take(params["word_emb"], input_ids, axis=0)
    pos_e = jnp.take(params["pos_emb"], pos_ids, axis=0)
    type_e = params["type_emb"][0][None, None, :]
    emb = (word_e + pos_e + type_e).astype(jnp.float32).reshape(B * S, HIDDEN)

    # O(B*S) mask ingredients; the (BS, BS) bias itself is built inside the kernel.
    batch_ids = (jnp.arange(B * S, dtype=jnp.int32) // S).astype(jnp.float32)
    row_bid = batch_ids.reshape(B * S, 1)
    col_bid = batch_ids.reshape(1, B * S)
    key_valid = mask_i.reshape(1, B * S).astype(jnp.float32)

    kern = functools.partial(
        _phobert_fused_kernel,
        n_layers=N_LAYERS, n_heads=N_HEADS, head_dim=HEAD_DIM,
        hidden=HIDDEN, batch=B, seq=S)

    inputs = (
        emb, row_bid, col_bid, key_valid,
        params["emb_ln_g"], params["emb_ln_b"],
        params["qkv_w"], params["qkv_b"], params["o_w"], params["o_b"],
        params["attn_ln_g"], params["attn_ln_b"],
        params["ffn_in_w"], params["ffn_in_b"],
        params["ffn_out_w"], params["ffn_out_b"],
        params["ffn_ln_g"], params["ffn_ln_b"],
        params["cls_w"], params["cls_b"],
    )

    logits_pad = pl.pallas_call(
        kern,
        out_shape=jax.ShapeDtypeStruct((B, LANE), jnp.float32),
        in_specs=[_vmem_spec()] * len(inputs),
        out_specs=_vmem_spec(),
        compiler_params=pltpu.CompilerParams(
            # v5e's scoped-VMEM default is only 16 MiB; set explicitly.
            vmem_limit_bytes=32 * 1024 * 1024),
    )(*inputs)

    # classifier logits at the CLS (<s>) token of each sequence
    return logits_pad[:, :N_LABELS]


# ---------------------------- main ----------------------------

if __name__ == "__main__":
    key = jax.random.PRNGKey(0)
    k_param, k_ids = jax.random.split(key)

    B, S = 2, 8
    params = init_params(k_param)
    input_ids = jax.random.randint(k_ids, (B, S), 2, VOCAB, dtype=jnp.int32)
    attention_mask = jnp.ones((B, S), dtype=jnp.int32)
    # pad the tail of the second sequence
    attention_mask = attention_mask.at[1, 6:].set(0)
    input_ids = input_ids.at[1, 6:].set(PAD_ID)

    fwd = jax.jit(phobert_classifier_forward)
    logits = fwd(params, input_ids, attention_mask)
    jax.block_until_ready(logits)

    assert logits.shape == (B, N_LABELS) and logits.dtype == jnp.float32
    assert bool(jnp.all(jnp.isfinite(logits)))
    print("KERNEL_OK")
</pallas_src>

<mosaic_0001>
module attributes {stable_mosaic.version = 11 : i64} {
  func.func @_phobert_fused_kernel(%arg0: memref<16x32xf32, #tpu.memory_space<vmem>>, %arg1: memref<16x1xf32, #tpu.memory_space<vmem>>, %arg2: memref<1x16xf32, #tpu.memory_space<vmem>>, %arg3: memref<1x16xf32, #tpu.memory_space<vmem>>, %arg4: memref<1x32xf32, #tpu.memory_space<vmem>>, %arg5: memref<1x32xf32, #tpu.memory_space<vmem>>, %arg6: memref<2x32x96xbf16, #tpu.memory_space<vmem>>, %arg7: memref<2x1x96xf32, #tpu.memory_space<vmem>>, %arg8: memref<2x32x32xbf16, #tpu.memory_space<vmem>>, %arg9: memref<2x1x32xf32, #tpu.memory_space<vmem>>, %arg10: memref<2x1x32xf32, #tpu.memory_space<vmem>>, %arg11: memref<2x1x32xf32, #tpu.memory_space<vmem>>, %arg12: memref<2x32x64xbf16, #tpu.memory_space<vmem>>, %arg13: memref<2x1x64xf32, #tpu.memory_space<vmem>>, %arg14: memref<2x64x32xbf16, #tpu.memory_space<vmem>>, %arg15: memref<2x1x32xf32, #tpu.memory_space<vmem>>, %arg16: memref<2x1x32xf32, #tpu.memory_space<vmem>>, %arg17: memref<2x1x32xf32, #tpu.memory_space<vmem>>, %arg18: memref<32x128xbf16, #tpu.memory_space<vmem>>, %arg19: memref<1x128xf32, #tpu.memory_space<vmem>>, %arg20: memref<2x128xf32, #tpu.memory_space<vmem>>) attributes {dimension_semantics = [], scalar_prefetch = 0 : i64, scratch_operands = 0 : i64, tpu.core_type = #tpu.core_type<tc>} {
    %c0 = arith.constant 0 : index
    %c0_0 = arith.constant 0 : index
    %0 = vector.load %arg1[%c0, %c0_0] : memref<16x1xf32, #tpu.memory_space<vmem>>, vector<16x1xf32>
    %c0_1 = arith.constant 0 : index
    %c0_2 = arith.constant 0 : index
    %1 = vector.load %arg2[%c0_1, %c0_2] : memref<1x16xf32, #tpu.memory_space<vmem>>, vector<1x16xf32>
    %2 = vector.broadcast %0 : vector<16x1xf32> to vector<16x16xf32>
    %3 = vector.broadcast %1 : vector<1x16xf32> to vector<16x16xf32>
    %4 = arith.cmpf oeq, %2, %3 : vector<16x16xf32>
    %c0_3 = arith.constant 0 : index
    %c0_4 = arith.constant 0 : index
    %5 = vector.load %arg3[%c0_3, %c0_4] : memref<1x16xf32, #tpu.memory_space<vmem>>, vector<1x16xf32>
    %cst = arith.constant 5.000000e-01 : f32
    %6 = vector.broadcast %cst : f32 to vector<1x16xf32>
    %7 = arith.cmpf ogt, %5, %6 : vector<1x16xf32>
    %8 = vector.broadcast %7 : vector<1x16xi1> to vector<16x16xi1>
    %9 = arith.andi %4, %8 : vector<16x16xi1>
    %cst_5 = arith.constant 0.000000e+00 : f32
    %cst_6 = arith.constant -1.000000e+09 : f32
    %10 = vector.broadcast %cst_5 : f32 to vector<16x16xf32>
    %11 = vector.broadcast %cst_6 : f32 to vector<16x16xf32>
    %12 = arith.select %9, %10, %11 : vector<16x16xi1>, vector<16x16xf32>
    %c0_7 = arith.constant 0 : index
    %c0_8 = arith.constant 0 : index
    %13 = vector.load %arg0[%c0_7, %c0_8] : memref<16x32xf32, #tpu.memory_space<vmem>>, vector<16x32xf32>
    %c0_9 = arith.constant 0 : index
    %c0_10 = arith.constant 0 : index
    %14 = vector.load %arg4[%c0_9, %c0_10] : memref<1x32xf32, #tpu.memory_space<vmem>>, vector<1x32xf32>
    %c0_11 = arith.constant 0 : index
    %c0_12 = arith.constant 0 : index
    %15 = vector.load %arg5[%c0_11, %c0_12] : memref<1x32xf32, #tpu.memory_space<vmem>>, vector<1x32xf32>
    %cst_13 = arith.constant dense<0.000000e+00> : vector<16xf32>
    %16 = vector.multi_reduction <add>, %13, %cst_13 [1] : vector<16x32xf32> to vector<16xf32>
    %17 = vector.shape_cast %16 : vector<16xf32> to vector<16x1xf32>
    %cst_14 = arith.constant 3.200000e+01 : f32
    %18 = vector.broadcast %cst_14 : f32 to vector<16x1xf32>
    %19 = arith.divf %17, %18 : vector<16x1xf32>
    %20 = vector.broadcast %19 : vector<16x1xf32> to vector<16x32xf32>
    %21 = arith.subf %13, %20 : vector<16x32xf32>
    %22 = arith.mulf %21, %21 : vector<16x32xf32>
    %cst_15 = arith.constant dense<0.000000e+00> : vector<16xf32>
    %23 = vector.multi_reduction <add>, %22, %cst_15 [1] : vector<16x32xf32> to vector<16xf32>
    %24 = vector.shape_cast %23 : vector<16xf32> to vector<16x1xf32>
    %cst_16 = arith.constant 3.200000e+01 : f32
    %25 = vector.broadcast %cst_16 : f32 to vector<16x1xf32>
    %26 = arith.divf %24, %25 : vector<16x1xf32>
    %27 = vector.broadcast %19 : vector<16x1xf32> to vector<16x32xf32>
    %28 = arith.subf %13, %27 : vector<16x32xf32>
    %cst_17 = arith.constant 9.99999974E-6 : f32
    %29 = vector.broadcast %cst_17 : f32 to vector<16x1xf32>
    %30 = arith.addf %26, %29 : vector<16x1xf32>
    %31 = math.rsqrt %30 : vector<16x1xf32>
    %32 = vector.broadcast %31 : vector<16x1xf32> to vector<16x32xf32>
    %33 = arith.mulf %28, %32 : vector<16x32xf32>
    %34 = vector.broadcast %14 : vector<1x32xf32> to vector<16x32xf32>
    %35 = arith.mulf %33, %34 : vector<16x32xf32>
    %36 = vector.broadcast %15 : vector<1x32xf32> to vector<16x32xf32>
    %37 = arith.addf %35, %36 : vector<16x32xf32>
    %38 = arith.truncf %37 : vector<16x32xf32> to vector<16x32xbf16>
    %c0_18 = arith.constant 0 : index
    %c0_19 = arith.constant 0 : index
    %c0_20 = arith.constant 0 : index
    %39 = vector.load %arg6[%c0_18, %c0_19, %c0_20] : memref<2x32x96xbf16, #tpu.memory_space<vmem>>, vector<1x32x96xbf16>
    %40 = vector.shape_cast %39 : vector<1x32x96xbf16> to vector<32x96xbf16>
    %cst_21 = arith.constant dense<0.000000e+00> : vector<16x96xf32>
    %41 = tpu.matmul %38, %40, %cst_21 {dimension_numbers = #tpu.dot_dimension_numbers<[1], [0], [0], [1], [0, 0, 1, 1], [], []>} : vector<16x32xbf16>, vector<32x96xbf16>, vector<16x96xf32> -> vector<16x96xf32>
    %c0_22 = arith.constant 0 : index
    %c0_23 = arith.constant 0 : index
    %c0_24 = arith.constant 0 : index
    %42 = vector.load %arg7[%c0_22, %c0_23, %c0_24] : memref<2x1x96xf32, #tpu.memory_space<vmem>>, vector<1x1x96xf32>
    %43 = vector.shape_cast %42 : vector<1x1x96xf32> to vector<1x96xf32>
    %44 = vector.broadcast %43 : vector<1x96xf32> to vector<16x96xf32>
    %45 = arith.addf %41, %44 : vector<16x96xf32>
    %46 = arith.truncf %45 : vector<16x96xf32> to vector<16x96xbf16>
    %47 = vector.extract_strided_slice %46 {offsets = [0, 0], sizes = [16, 8], strides = [1, 1]} : vector<16x96xbf16> to vector<16x8xbf16>
    %48 = vector.extract_strided_slice %46 {offsets = [0, 32], sizes = [16, 8], strides = [1, 1]} : vector<16x96xbf16> to vector<16x8xbf16>
    %49 = vector.extract_strided_slice %46 {offsets = [0, 64], sizes = [16, 8], strides = [1, 1]} : vector<16x96xbf16> to vector<16x8xbf16>
    %cst_25 = arith.constant dense<0.000000e+00> : vector<16x16xf32>
    %50 = tpu.matmul %47, %48, %cst_25 {dimension_numbers = #tpu.dot_dimension_numbers<[1], [1], [0], [0], [0, 0, 1, 0], [], []>} : vector<16x8xbf16>, vector<16x8xbf16>, vector<16x16xf32> -> vector<16x16xf32>
    %51 = arith.addf %50, %12 : vector<16x16xf32>
    %cst_26 = arith.constant dense<0xFF800000> : vector<16xf32>
    %52 = vector.multi_reduction <maximumf>, %51, %cst_26 [1] : vector<16x16xf32> to vector<16xf32>
    %53 = vector.shape_cast %52 : vector<16xf32> to vector<16x1xf32>
    %54 = vector.broadcast %53 : vector<16x1xf32> to vector<16x16xf32>
    %55 = arith.subf %51, %54 : vector<16x16xf32>
    %56 = math.exp %55 : vector<16x16xf32>
    %cst_27 = arith.constant dense<0.000000e+00> : vector<16xf32>
    %57 = vector.multi_reduction <add>, %56, %cst_27 [1] : vector<16x16xf32> to vector<16xf32>
    %58 = vector.shape_cast %57 : vector<16xf32> to vector<16x1xf32>
    %59 = tpu.reciprocal %58 {approx = true} : vector<16x1xf32> -> vector<16x1xf32>
    %60 = vector.broadcast %59 : vector<16x1xf32> to vector<16x16xf32>
    %61 = arith.mulf %56, %60 : vector<16x16xf32>
    %62 = arith.truncf %61 : vector<16x16xf32> to vector<16x16xbf16>
    %cst_28 = arith.constant dense<0.000000e+00> : vector<16x8xf32>
    %63 = tpu.matmul %62, %49, %cst_28 {dimension_numbers = #tpu.dot_dimension_numbers<[1], [0], [0], [1], [0, 0, 1, 1], [], []>} : vector<16x16xbf16>, vector<16x8xbf16>, vector<16x8xf32> -> vector<16x8xf32>
    %64 = vector.extract_strided_slice %46 {offsets = [0, 8], sizes = [16, 8], strides = [1, 1]} : vector<16x96xbf16> to vector<16x8xbf16>
    %65 = vector.extract_strided_slice %46 {offsets = [0, 40], sizes = [16, 8], strides = [1, 1]} : vector<16x96xbf16> to vector<16x8xbf16>
    %66 = vector.extract_strided_slice %46 {offsets = [0, 72], sizes = [16, 8], strides = [1, 1]} : vector<16x96xbf16> to vector<16x8xbf16>
    %cst_29 = arith.constant dense<0.000000e+00> : vector<16x16xf32>
    %67 = tpu.matmul %64, %65, %cst_29 {dimension_numbers = #tpu.dot_dimension_numbers<[1], [1], [0], [0], [0, 0, 1, 0], [], []>} : vector<16x8xbf16>, vector<16x8xbf16>, vector<16x16xf32> -> vector<16x16xf32>
    %68 = arith.addf %67, %12 : vector<16x16xf32>
    %cst_30 = arith.constant dense<0xFF800000> : vector<16xf32>
    %69 = vector.multi_reduction <maximumf>, %68, %cst_30 [1] : vector<16x16xf32> to vector<16xf32>
    %70 = vector.shape_cast %69 : vector<16xf32> to vector<16x1xf32>
    %71 = vector.broadcast %70 : vector<16x1xf32> to vector<16x16xf32>
    %72 = arith.subf %68, %71 : vector<16x16xf32>
    %73 = math.exp %72 : vector<16x16xf32>
    %cst_31 = arith.constant dense<0.000000e+00> : vector<16xf32>
    %74 = vector.multi_reduction <add>, %73, %cst_31 [1] : vector<16x16xf32> to vector<16xf32>
    %75 = vector.shape_cast %74 : vector<16xf32> to vector<16x1xf32>
    %76 = tpu.reciprocal %75 {approx = true} : vector<16x1xf32> -> vector<16x1xf32>
    %77 = vector.broadcast %76 : vector<16x1xf32> to vector<16x16xf32>
    %78 = arith.mulf %73, %77 : vector<16x16xf32>
    %79 = arith.truncf %78 : vector<16x16xf32> to vector<16x16xbf16>
    %cst_32 = arith.constant dense<0.000000e+00> : vector<16x8xf32>
    %80 = tpu.matmul %79, %66, %cst_32 {dimension_numbers = #tpu.dot_dimension_numbers<[1], [0], [0], [1], [0, 0, 1, 1], [], []>} : vector<16x16xbf16>, vector<16x8xbf16>, vector<16x8xf32> -> vector<16x8xf32>
    %81 = vector.extract_strided_slice %46 {offsets = [0, 16], sizes = [16, 8], strides = [1, 1]} : vector<16x96xbf16> to vector<16x8xbf16>
    %82 = vector.extract_strided_slice %46 {offsets = [0, 48], sizes = [16, 8], strides = [1, 1]} : vector<16x96xbf16> to vector<16x8xbf16>
    %83 = vector.extract_strided_slice %46 {offsets = [0, 80], sizes = [16, 8], strides = [1, 1]} : vector<16x96xbf16> to vector<16x8xbf16>
    %cst_33 = arith.constant dense<0.000000e+00> : vector<16x16xf32>
    %84 = tpu.matmul %81, %82, %cst_33 {dimension_numbers = #tpu.dot_dimension_numbers<[1], [1], [0], [0], [0, 0, 1, 0], [], []>} : vector<16x8xbf16>, vector<16x8xbf16>, vector<16x16xf32> -> vector<16x16xf32>
    %85 = arith.addf %84, %12 : vector<16x16xf32>
    %cst_34 = arith.constant dense<0xFF800000> : vector<16xf32>
    %86 = vector.multi_reduction <maximumf>, %85, %cst_34 [1] : vector<16x16xf32> to vector<16xf32>
    %87 = vector.shape_cast %86 : vector<16xf32> to vector<16x1xf32>
    %88 = vector.broadcast %87 : vector<16x1xf32> to vector<16x16xf32>
    %89 = arith.subf %85, %88 : vector<16x16xf32>
    %90 = math.exp %89 : vector<16x16xf32>
    %cst_35 = arith.constant dense<0.000000e+00> : vector<16xf32>
    %91 = vector.multi_reduction <add>, %90, %cst_35 [1] : vector<16x16xf32> to vector<16xf32>
    %92 = vector.shape_cast %91 : vector<16xf32> to vector<16x1xf32>
    %93 = tpu.reciprocal %92 {approx = true} : vector<16x1xf32> -> vector<16x1xf32>
    %94 = vector.broadcast %93 : vector<16x1xf32> to vector<16x16xf32>
    %95 = arith.mulf %90, %94 : vector<16x16xf32>
    %96 = arith.truncf %95 : vector<16x16xf32> to vector<16x16xbf16>
    %cst_36 = arith.constant dense<0.000000e+00> : vector<16x8xf32>
    %97 = tpu.matmul %96, %83, %cst_36 {dimension_numbers = #tpu.dot_dimension_numbers<[1], [0], [0], [1], [0, 0, 1, 1], [], []>} : vector<16x16xbf16>, vector<16x8xbf16>, vector<16x8xf32> -> vector<16x8xf32>
    %98 = vector.extract_strided_slice %46 {offsets = [0, 24], sizes = [16, 8], strides = [1, 1]} : vector<16x96xbf16> to vector<16x8xbf16>
    %99 = vector.extract_strided_slice %46 {offsets = [0, 56], sizes = [16, 8], strides = [1, 1]} : vector<16x96xbf16> to vector<16x8xbf16>
    %100 = vector.extract_strided_slice %46 {offsets = [0, 88], sizes = [16, 8], strides = [1, 1]} : vector<16x96xbf16> to vector<16x8xbf16>
    %cst_37 = arith.constant dense<0.000000e+00> : vector<16x16xf32>
    %101 = tpu.matmul %98, %99, %cst_37 {dimension_numbers = #tpu.dot_dimension_numbers<[1], [1], [0], [0], [0, 0, 1, 0], [], []>} : vector<16x8xbf16>, vector<16x8xbf16>, vector<16x16xf32> -> vector<16x16xf32>
    %102 = arith.addf %101, %12 : vector<16x16xf32>
    %cst_38 = arith.constant dense<0xFF800000> : vector<16xf32>
    %103 = vector.multi_reduction <maximumf>, %102, %cst_38 [1] : vector<16x16xf32> to vector<16xf32>
    %104 = vector.shape_cast %103 : vector<16xf32> to vector<16x1xf32>
    %105 = vector.broadcast %104 : vector<16x1xf32> to vector<16x16xf32>
    %106 = arith.subf %102, %105 : vector<16x16xf32>
    %107 = math.exp %106 : vector<16x16xf32>
    %cst_39 = arith.constant dense<0.000000e+00> : vector<16xf32>
    %108 = vector.multi_reduction <add>, %107, %cst_39 [1] : vector<16x16xf32> to vector<16xf32>
    %109 = vector.shape_cast %108 : vector<16xf32> to vector<16x1xf32>
    %110 = tpu.reciprocal %109 {approx = true} : vector<16x1xf32> -> vector<16x1xf32>
    %111 = vector.broadcast %110 : vector<16x1xf32> to vector<16x16xf32>
    %112 = arith.mulf %107, %111 : vector<16x16xf32>
    %113 = arith.truncf %112 : vector<16x16xf32> to vector<16x16xbf16>
    %cst_40 = arith.constant dense<0.000000e+00> : vector<16x8xf32>
    %114 = tpu.matmul %113, %100, %cst_40 {dimension_numbers = #tpu.dot_dimension_numbers<[1], [0], [0], [1], [0, 0, 1, 1], [], []>} : vector<16x16xbf16>, vector<16x8xbf16>, vector<16x8xf32> -> vector<16x8xf32>
    %115 = tpu.concatenate %63, %80, %97, %114 in 1 : vector<16x8xf32>, vector<16x8xf32>, vector<16x8xf32>, vector<16x8xf32> -> vector<16x32xf32>
    %116 = arith.truncf %115 : vector<16x32xf32> to vector<16x32xbf16>
    %c0_41 = arith.constant 0 : index
    %c0_42 = arith.constant 0 : index
    %c0_43 = arith.constant 0 : index
    %117 = vector.load %arg8[%c0_41, %c0_42, %c0_43] : memref<2x32x32xbf16, #tpu.memory_space<vmem>>, vector<1x32x32xbf16>
    %118 = vector.shape_cast %117 : vector<1x32x32xbf16> to vector<32x32xbf16>
    %cst_44 = arith.constant dense<0.000000e+00> : vector<16x32xf32>
    %119 = tpu.matmul %116, %118, %cst_44 {dimension_numbers = #tpu.dot_dimension_numbers<[1], [0], [0], [1], [0, 0, 1, 1], [], []>} : vector<16x32xbf16>, vector<32x32xbf16>, vector<16x32xf32> -> vector<16x32xf32>
    %c0_45 = arith.constant 0 : index
    %c0_46 = arith.constant 0 : index
    %c0_47 = arith.constant 0 : index
    %120 = vector.load %arg9[%c0_45, %c0_46, %c0_47] : memref<2x1x32xf32, #tpu.memory_space<vmem>>, vector<1x1x32xf32>
    %121 = vector.shape_cast %120 : vector<1x1x32xf32> to vector<1x32xf32>
    %122 = vector.broadcast %121 : vector<1x32xf32> to vector<16x32xf32>
    %123 = arith.addf %119, %122 : vector<16x32xf32>
    %124 = arith.addf %123, %37 : vector<16x32xf32>
    %c0_48 = arith.constant 0 : index
    %c0_49 = arith.constant 0 : index
    %c0_50 = arith.constant 0 : index
    %125 = vector.load %arg10[%c0_48, %c0_49, %c0_50] : memref<2x1x32xf32, #tpu.memory_space<vmem>>, vector<1x1x32xf32>
    %126 = vector.shape_cast %125 : vector<1x1x32xf32> to vector<1x32xf32>
    %c0_51 = arith.constant 0 : index
    %c0_52 = arith.constant 0 : index
    %c0_53 = arith.constant 0 : index
    %127 = vector.load %arg11[%c0_51, %c0_52, %c0_53] : memref<2x1x32xf32, #tpu.memory_space<vmem>>, vector<1x1x32xf32>
    %128 = vector.shape_cast %127 : vector<1x1x32xf32> to vector<1x32xf32>
    %cst_54 = arith.constant dense<0.000000e+00> : vector<16xf32>
    %129 = vector.multi_reduction <add>, %124, %cst_54 [1] : vector<16x32xf32> to vector<16xf32>
    %130 = vector.shape_cast %129 : vector<16xf32> to vector<16x1xf32>
    %cst_55 = arith.constant 3.200000e+01 : f32
    %131 = vector.broadcast %cst_55 : f32 to vector<16x1xf32>
    %132 = arith.divf %130, %131 : vector<16x1xf32>
    %133 = vector.broadcast %132 : vector<16x1xf32> to vector<16x32xf32>
    %134 = arith.subf %124, %133 : vector<16x32xf32>
    %135 = arith.mulf %134, %134 : vector<16x32xf32>
    %cst_56 = arith.constant dense<0.000000e+00> : vector<16xf32>
    %136 = vector.multi_reduction <add>, %135, %cst_56 [1] : vector<16x32xf32> to vector<16xf32>
    %137 = vector.shape_cast %136 : vector<16xf32> to vector<16x1xf32>
    %cst_57 = arith.constant 3.200000e+01 : f32
    %138 = vector.broadcast %cst_57 : f32 to vector<16x1xf32>
    %139 = arith.divf %137, %138 : vector<16x1xf32>
    %140 = vector.broadcast %132 : vector<16x1xf32> to vector<16x32xf32>
    %141 = arith.subf %124, %140 : vector<16x32xf32>
    %cst_58 = arith.constant 9.99999974E-6 : f32
    %142 = vector.broadcast %cst_58 : f32 to vector<16x1xf32>
    %143 = arith.addf %139, %142 : vector<16x1xf32>
    %144 = math.rsqrt %143 : vector<16x1xf32>
    %145 = vector.broadcast %144 : vector<16x1xf32> to vector<16x32xf32>
    %146 = arith.mulf %141, %145 : vector<16x32xf32>
    %147 = vector.broadcast %126 : vector<1x32xf32> to vector<16x32xf32>
    %148 = arith.mulf %146, %147 : vector<16x32xf32>
    %149 = vector.broadcast %128 : vector<1x32xf32> to vector<16x32xf32>
    %150 = arith.addf %148, %149 : vector<16x32xf32>
    %151 = arith.truncf %150 : vector<16x32xf32> to vector<16x32xbf16>
    %c0_59 = arith.constant 0 : index
    %c0_60 = arith.constant 0 : index
    %c0_61 = arith.constant 0 : index
    %152 = vector.load %arg12[%c0_59, %c0_60, %c0_61] : memref<2x32x64xbf16, #tpu.memory_space<vmem>>, vector<1x32x64xbf16>
    %153 = vector.shape_cast %152 : vector<1x32x64xbf16> to vector<32x64xbf16>
    %cst_62 = arith.constant dense<0.000000e+00> : vector<16x64xf32>
    %154 = tpu.matmul %151, %153, %cst_62 {dimension_numbers = #tpu.dot_dimension_numbers<[1], [0], [0], [1], [0, 0, 1, 1], [], []>} : vector<16x32xbf16>, vector<32x64xbf16>, vector<16x64xf32> -> vector<16x64xf32>
    %c0_63 = arith.constant 0 : index
    %c0_64 = arith.constant 0 : index
    %c0_65 = arith.constant 0 : index
    %155 = vector.load %arg13[%c0_63, %c0_64, %c0_65] : memref<2x1x64xf32, #tpu.memory_space<vmem>>, vector<1x1x64xf32>
    %156 = vector.shape_cast %155 : vector<1x1x64xf32> to vector<1x64xf32>
    %157 = vector.broadcast %156 : vector<1x64xf32> to vector<16x64xf32>
    %158 = arith.addf %154, %157 : vector<16x64xf32>
    %159 = arith.mulf %158, %158 : vector<16x64xf32>
    %160 = arith.mulf %158, %159 : vector<16x64xf32>
    %cst_66 = arith.constant 4.471500e-02 : f32
    %161 = vector.broadcast %cst_66 : f32 to vector<16x64xf32>
    %162 = arith.mulf %161, %160 : vector<16x64xf32>
    %163 = arith.addf %158, %162 : vector<16x64xf32>
    %cst_67 = arith.constant 0.797884583 : f32
    %164 = vector.broadcast %cst_67 : f32 to vector<16x64xf32>
    %165 = arith.mulf %164, %163 : vector<16x64xf32>
    %166 = math.tanh %165 : vector<16x64xf32>
    %cst_68 = arith.constant 1.000000e+00 : f32
    %167 = vector.broadcast %cst_68 : f32 to vector<16x64xf32>
    %168 = arith.addf %167, %166 : vector<16x64xf32>
    %cst_69 = arith.constant 5.000000e-01 : f32
    %169 = vector.broadcast %cst_69 : f32 to vector<16x64xf32>
    %170 = arith.mulf %169, %168 : vector<16x64xf32>
    %171 = arith.mulf %158, %170 : vector<16x64xf32>
    %172 = arith.truncf %171 : vector<16x64xf32> to vector<16x64xbf16>
    %c0_70 = arith.constant 0 : index
    %c0_71 = arith.constant 0 : index
    %c0_72 = arith.constant 0 : index
    %173 = vector.load %arg14[%c0_70, %c0_71, %c0_72] : memref<2x64x32xbf16, #tpu.memory_space<vmem>>, vector<1x64x32xbf16>
    %174 = vector.shape_cast %173 : vector<1x64x32xbf16> to vector<64x32xbf16>
    %cst_73 = arith.constant dense<0.000000e+00> : vector<16x32xf32>
    %175 = tpu.matmul %172, %174, %cst_73 {dimension_numbers = #tpu.dot_dimension_numbers<[1], [0], [0], [1], [0, 0, 1, 1], [], []>} : vector<16x64xbf16>, vector<64x32xbf16>, vector<16x32xf32> -> vector<16x32xf32>
    %c0_74 = arith.constant 0 : index
    %c0_75 = arith.constant 0 : index
    %c0_76 = arith.constant 0 : index
    %176 = vector.load %arg15[%c0_74, %c0_75, %c0_76] : memref<2x1x32xf32, #tpu.memory_space<vmem>>, vector<1x1x32xf32>
    %177 = vector.shape_cast %176 : vector<1x1x32xf32> to vector<1x32xf32>
    %178 = vector.broadcast %177 : vector<1x32xf32> to vector<16x32xf32>
    %179 = arith.addf %175, %178 : vector<16x32xf32>
    %180 = arith.addf %179, %150 : vector<16x32xf32>
    %c0_77 = arith.constant 0 : index
    %c0_78 = arith.constant 0 : index
    %c0_79 = arith.constant 0 : index
    %181 = vector.load %arg16[%c0_77, %c0_78, %c0_79] : memref<2x1x32xf32, #tpu.memory_space<vmem>>, vector<1x1x32xf32>
    %182 = vector.shape_cast %181 : vector<1x1x32xf32> to vector<1x32xf32>
    %c0_80 = arith.constant 0 : index
    %c0_81 = arith.constant 0 : index
    %c0_82 = arith.constant 0 : index
    %183 = vector.load %arg17[%c0_80, %c0_81, %c0_82] : memref<2x1x32xf32, #tpu.memory_space<vmem>>, vector<1x1x32xf32>
    %184 = vector.shape_cast %183 : vector<1x1x32xf32> to vector<1x32xf32>
    %cst_83 = arith.constant dense<0.000000e+00> : vector<16xf32>
    %185 = vector.multi_reduction <add>, %180, %cst_83 [1] : vector<16x32xf32> to vector<16xf32>
    %186 = vector.shape_cast %185 : vector<16xf32> to vector<16x1xf32>
    %cst_84 = arith.constant 3.200000e+01 : f32
    %187 = vector.broadcast %cst_84 : f32 to vector<16x1xf32>
    %188 = arith.divf %186, %187 : vector<16x1xf32>
    %189 = vector.broadcast %188 : vector<16x1xf32> to vector<16x32xf32>
    %190 = arith.subf %180, %189 : vector<16x32xf32>
    %191 = arith.mulf %190, %190 : vector<16x32xf32>
    %cst_85 = arith.constant dense<0.000000e+00> : vector<16xf32>
    %192 = vector.multi_reduction <add>, %191, %cst_85 [1] : vector<16x32xf32> to vector<16xf32>
    %193 = vector.shape_cast %192 : vector<16xf32> to vector<16x1xf32>
    %cst_86 = arith.constant 3.200000e+01 : f32
    %194 = vector.broadcast %cst_86 : f32 to vector<16x1xf32>
    %195 = arith.divf %193, %194 : vector<16x1xf32>
    %196 = vector.broadcast %188 : vector<16x1xf32> to vector<16x32xf32>
    %197 = arith.subf %180, %196 : vector<16x32xf32>
    %cst_87 = arith.constant 9.99999974E-6 : f32
    %198 = vector.broadcast %cst_87 : f32 to vector<16x1xf32>
    %199 = arith.addf %195, %198 : vector<16x1xf32>
    %200 = math.rsqrt %199 : vector<16x1xf32>
    %201 = vector.broadcast %200 : vector<16x1xf32> to vector<16x32xf32>
    %202 = arith.mulf %197, %201 : vector<16x32xf32>
    %203 = vector.broadcast %182 : vector<1x32xf32> to vector<16x32xf32>
    %204 = arith.mulf %202, %203 : vector<16x32xf32>
    %205 = vector.broadcast %184 : vector<1x32xf32> to vector<16x32xf32>
    %206 = arith.addf %204, %205 : vector<16x32xf32>
    %207 = arith.truncf %206 : vector<16x32xf32> to vector<16x32xbf16>
    %c1 = arith.constant 1 : index
    %c0_88 = arith.constant 0 : index
    %c0_89 = arith.constant 0 : index
    %208 = vector.load %arg6[%c1, %c0_88, %c0_89] : memref<2x32x96xbf16, #tpu.memory_space<vmem>>, vector<1x32x96xbf16>
    %209 = vector.shape_cast %208 : vector<1x32x96xbf16> to vector<32x96xbf16>
    %cst_90 = arith.constant dense<0.000000e+00> : vector<16x96xf32>
    %210 = tpu.matmul %207, %209, %cst_90 {dimension_numbers = #tpu.dot_dimension_numbers<[1], [0], [0], [1], [0, 0, 1, 1], [], []>} : vector<16x32xbf16>, vector<32x96xbf16>, vector<16x96xf32> -> vector<16x96xf32>
    %c1_91 = arith.constant 1 : index
    %c0_92 = arith.constant 0 : index
    %c0_93 = arith.constant 0 : index
    %211 = vector.load %arg7[%c1_91, %c0_92, %c0_93] : memref<2x1x96xf32, #tpu.memory_space<vmem>>, vector<1x1x96xf32>
    %212 = vector.shape_cast %211 : vector<1x1x96xf32> to vector<1x96xf32>
    %213 = vector.broadcast %212 : vector<1x96xf32> to vector<16x96xf32>
    %214 = arith.addf %210, %213 : vector<16x96xf32>
    %215 = arith.truncf %214 : vector<16x96xf32> to vector<16x96xbf16>
    %216 = vector.extract_strided_slice %215 {offsets = [0, 0], sizes = [16, 8], strides = [1, 1]} : vector<16x96xbf16> to vector<16x8xbf16>
    %217 = vector.extract_strided_slice %215 {offsets = [0, 32], sizes = [16, 8], strides = [1, 1]} : vector<16x96xbf16> to vector<16x8xbf16>
    %218 = vector.extract_strided_slice %215 {offsets = [0, 64], sizes = [16, 8], strides = [1, 1]} : vector<16x96xbf16> to vector<16x8xbf16>
    %cst_94 = arith.constant dense<0.000000e+00> : vector<16x16xf32>
    %219 = tpu.matmul %216, %217, %cst_94 {dimension_numbers = #tpu.dot_dimension_numbers<[1], [1], [0], [0], [0, 0, 1, 0], [], []>} : vector<16x8xbf16>, vector<16x8xbf16>, vector<16x16xf32> -> vector<16x16xf32>
    %220 = arith.addf %219, %12 : vector<16x16xf32>
    %cst_95 = arith.constant dense<0xFF800000> : vector<16xf32>
    %221 = vector.multi_reduction <maximumf>, %220, %cst_95 [1] : vector<16x16xf32> to vector<16xf32>
    %222 = vector.shape_cast %221 : vector<16xf32> to vector<16x1xf32>
    %223 = vector.broadcast %222 : vector<16x1xf32> to vector<16x16xf32>
    %224 = arith.subf %220, %223 : vector<16x16xf32>
    %225 = math.exp %224 : vector<16x16xf32>
    %cst_96 = arith.constant dense<0.000000e+00> : vector<16xf32>
    %226 = vector.multi_reduction <add>, %225, %cst_96 [1] : vector<16x16xf32> to vector<16xf32>
    %227 = vector.shape_cast %226 : vector<16xf32> to vector<16x1xf32>
    %228 = tpu.reciprocal %227 {approx = true} : vector<16x1xf32> -> vector<16x1xf32>
    %229 = vector.broadcast %228 : vector<16x1xf32> to vector<16x16xf32>
    %230 = arith.mulf %225, %229 : vector<16x16xf32>
    %231 = arith.truncf %230 : vector<16x16xf32> to vector<16x16xbf16>
    %cst_97 = arith.constant dense<0.000000e+00> : vector<16x8xf32>
    %232 = tpu.matmul %231, %218, %cst_97 {dimension_numbers = #tpu.dot_dimension_numbers<[1], [0], [0], [1], [0, 0, 1, 1], [], []>} : vector<16x16xbf16>, vector<16x8xbf16>, vector<16x8xf32> -> vector<16x8xf32>
    %233 = vector.extract_strided_slice %215 {offsets = [0, 8], sizes = [16, 8], strides = [1, 1]} : vector<16x96xbf16> to vector<16x8xbf16>
    %234 = vector.extract_strided_slice %215 {offsets = [0, 40], sizes = [16, 8], strides = [1, 1]} : vector<16x96xbf16> to vector<16x8xbf16>
    %235 = vector.extract_strided_slice %215 {offsets = [0, 72], sizes = [16, 8], strides = [1, 1]} : vector<16x96xbf16> to vector<16x8xbf16>
    %cst_98 = arith.constant dense<0.000000e+00> : vector<16x16xf32>
    %236 = tpu.matmul %233, %234, %cst_98 {dimension_numbers = #tpu.dot_dimension_numbers<[1], [1], [0], [0], [0, 0, 1, 0], [], []>} : vector<16x8xbf16>, vector<16x8xbf16>, vector<16x16xf32> -> vector<16x16xf32>
    %237 = arith.addf %236, %12 : vector<16x16xf32>
    %cst_99 = arith.constant dense<0xFF800000> : vector<16xf32>
    %238 = vector.multi_reduction <maximumf>, %237, %cst_99 [1] : vector<16x16xf32> to vector<16xf32>
    %239 = vector.shape_cast %238 : vector<16xf32> to vector<16x1xf32>
    %240 = vector.broadcast %239 : vector<16x1xf32> to vector<16x16xf32>
    %241 = arith.subf %237, %240 : vector<16x16xf32>
    %242 = math.exp %241 : vector<16x16xf32>
    %cst_100 = arith.constant dense<0.000000e+00> : vector<16xf32>
    %243 = vector.multi_reduction <add>, %242, %cst_100 [1] : vector<16x16xf32> to vector<16xf32>
    %244 = vector.shape_cast %243 : vector<16xf32> to vector<16x1xf32>
    %245 = tpu.reciprocal %244 {approx = true} : vector<16x1xf32> -> vector<16x1xf32>
    %246 = vector.broadcast %245 : vector<16x1xf32> to vector<16x16xf32>
    %247 = arith.mulf %242, %246 : vector<16x16xf32>
    %248 = arith.truncf %247 : vector<16x16xf32> to vector<16x16xbf16>
    %cst_101 = arith.constant dense<0.000000e+00> : vector<16x8xf32>
    %249 = tpu.matmul %248, %235, %cst_101 {dimension_numbers = #tpu.dot_dimension_numbers<[1], [0], [0], [1], [0, 0, 1, 1], [], []>} : vector<16x16xbf16>, vector<16x8xbf16>, vector<16x8xf32> -> vector<16x8xf32>
    %250 = vector.extract_strided_slice %215 {offsets = [0, 16], sizes = [16, 8], strides = [1, 1]} : vector<16x96xbf16> to vector<16x8xbf16>
    %251 = vector.extract_strided_slice %215 {offsets = [0, 48], sizes = [16, 8], strides = [1, 1]} : vector<16x96xbf16> to vector<16x8xbf16>
    %252 = vector.extract_strided_slice %215 {offsets = [0, 80], sizes = [16, 8], strides = [1, 1]} : vector<16x96xbf16> to vector<16x8xbf16>
    %cst_102 = arith.constant dense<0.000000e+00> : vector<16x16xf32>
    %253 = tpu.matmul %250, %251, %cst_102 {dimension_numbers = #tpu.dot_dimension_numbers<[1], [1], [0], [0], [0, 0, 1, 0], [], []>} : vector<16x8xbf16>, vector<16x8xbf16>, vector<16x16xf32> -> vector<16x16xf32>
    %254 = arith.addf %253, %12 : vector<16x16xf32>
    %cst_103 = arith.constant dense<0xFF800000> : vector<16xf32>
    %255 = vector.multi_reduction <maximumf>, %254, %cst_103 [1] : vector<16x16xf32> to vector<16xf32>
    %256 = vector.shape_cast %255 : vector<16xf32> to vector<16x1xf32>
    %257 = vector.broadcast %256 : vector<16x1xf32> to vector<16x16xf32>
    %258 = arith.subf %254, %257 : vector<16x16xf32>
    %259 = math.exp %258 : vector<16x16xf32>
    %cst_104 = arith.constant dense<0.000000e+00> : vector<16xf32>
    %260 = vector.multi_reduction <add>, %259, %cst_104 [1] : vector<16x16xf32> to vector<16xf32>
    %261 = vector.shape_cast %260 : vector<16xf32> to vector<16x1xf32>
    %262 = tpu.reciprocal %261 {approx = true} : vector<16x1xf32> -> vector<16x1xf32>
    %263 = vector.broadcast %262 : vector<16x1xf32> to vector<16x16xf32>
    %264 = arith.mulf %259, %263 : vector<16x16xf32>
    %265 = arith.truncf %264 : vector<16x16xf32> to vector<16x16xbf16>
    %cst_105 = arith.constant dense<0.000000e+00> : vector<16x8xf32>
    %266 = tpu.matmul %265, %252, %cst_105 {dimension_numbers = #tpu.dot_dimension_numbers<[1], [0], [0], [1], [0, 0, 1, 1], [], []>} : vector<16x16xbf16>, vector<16x8xbf16>, vector<16x8xf32> -> vector<16x8xf32>
    %267 = vector.extract_strided_slice %215 {offsets = [0, 24], sizes = [16, 8], strides = [1, 1]} : vector<16x96xbf16> to vector<16x8xbf16>
    %268 = vector.extract_strided_slice %215 {offsets = [0, 56], sizes = [16, 8], strides = [1, 1]} : vector<16x96xbf16> to vector<16x8xbf16>
    %269 = vector.extract_strided_slice %215 {offsets = [0, 88], sizes = [16, 8], strides = [1, 1]} : vector<16x96xbf16> to vector<16x8xbf16>
    %cst_106 = arith.constant dense<0.000000e+00> : vector<16x16xf32>
    %270 = tpu.matmul %267, %268, %cst_106 {dimension_numbers = #tpu.dot_dimension_numbers<[1], [1], [0], [0], [0, 0, 1, 0], [], []>} : vector<16x8xbf16>, vector<16x8xbf16>, vector<16x16xf32> -> vector<16x16xf32>
    %271 = arith.addf %270, %12 : vector<16x16xf32>
    %cst_107 = arith.constant dense<0xFF800000> : vector<16xf32>
    %272 = vector.multi_reduction <maximumf>, %271, %cst_107 [1] : vector<16x16xf32> to vector<16xf32>
    %273 = vector.shape_cast %272 : vector<16xf32> to vector<16x1xf32>
    %274 = vector.broadcast %273 : vector<16x1xf32> to vector<16x16xf32>
    %275 = arith.subf %271, %274 : vector<16x16xf32>
    %276 = math.exp %275 : vector<16x16xf32>
    %cst_108 = arith.constant dense<0.000000e+00> : vector<16xf32>
    %277 = vector.multi_reduction <add>, %276, %cst_108 [1] : vector<16x16xf32> to vector<16xf32>
    %278 = vector.shape_cast %277 : vector<16xf32> to vector<16x1xf32>
    %279 = tpu.reciprocal %278 {approx = true} : vector<16x1xf32> -> vector<16x1xf32>
    %280 = vector.broadcast %279 : vector<16x1xf32> to vector<16x16xf32>
    %281 = arith.mulf %276, %280 : vector<16x16xf32>
    %282 = arith.truncf %281 : vector<16x16xf32> to vector<16x16xbf16>
    %cst_109 = arith.constant dense<0.000000e+00> : vector<16x8xf32>
    %283 = tpu.matmul %282, %269, %cst_109 {dimension_numbers = #tpu.dot_dimension_numbers<[1], [0], [0], [1], [0, 0, 1, 1], [], []>} : vector<16x16xbf16>, vector<16x8xbf16>, vector<16x8xf32> -> vector<16x8xf32>
    %284 = tpu.concatenate %232, %249, %266, %283 in 1 : vector<16x8xf32>, vector<16x8xf32>, vector<16x8xf32>, vector<16x8xf32> -> vector<16x32xf32>
    %285 = arith.truncf %284 : vector<16x32xf32> to vector<16x32xbf16>
    %c1_110 = arith.constant 1 : index
    %c0_111 = arith.constant 0 : index
    %c0_112 = arith.constant 0 : index
    %286 = vector.load %arg8[%c1_110, %c0_111, %c0_112] : memref<2x32x32xbf16, #tpu.memory_space<vmem>>, vector<1x32x32xbf16>
    %287 = vector.shape_cast %286 : vector<1x32x32xbf16> to vector<32x32xbf16>
    %cst_113 = arith.constant dense<0.000000e+00> : vector<16x32xf32>
    %288 = tpu.matmul %285, %287, %cst_113 {dimension_numbers = #tpu.dot_dimension_numbers<[1], [0], [0], [1], [0, 0, 1, 1], [], []>} : vector<16x32xbf16>, vector<32x32xbf16>, vector<16x32xf32> -> vector<16x32xf32>
    %c1_114 = arith.constant 1 : index
    %c0_115 = arith.constant 0 : index
    %c0_116 = arith.constant 0 : index
    %289 = vector.load %arg9[%c1_114, %c0_115, %c0_116] : memref<2x1x32xf32, #tpu.memory_space<vmem>>, vector<1x1x32xf32>
    %290 = vector.shape_cast %289 : vector<1x1x32xf32> to vector<1x32xf32>
    %291 = vector.broadcast %290 : vector<1x32xf32> to vector<16x32xf32>
    %292 = arith.addf %288, %291 : vector<16x32xf32>
    %293 = arith.addf %292, %206 : vector<16x32xf32>
    %c1_117 = arith.constant 1 : index
    %c0_118 = arith.constant 0 : index
    %c0_119 = arith.constant 0 : index
    %294 = vector.load %arg10[%c1_117, %c0_118, %c0_119] : memref<2x1x32xf32, #tpu.memory_space<vmem>>, vector<1x1x32xf32>
    %295 = vector.shape_cast %294 : vector<1x1x32xf32> to vector<1x32xf32>
    %c1_120 = arith.constant 1 : index
    %c0_121 = arith.constant 0 : index
    %c0_122 = arith.constant 0 : index
    %296 = vector.load %arg11[%c1_120, %c0_121, %c0_122] : memref<2x1x32xf32, #tpu.memory_space<vmem>>, vector<1x1x32xf32>
    %297 = vector.shape_cast %296 : vector<1x1x32xf32> to vector<1x32xf32>
    %cst_123 = arith.constant dense<0.000000e+00> : vector<16xf32>
    %298 = vector.multi_reduction <add>, %293, %cst_123 [1] : vector<16x32xf32> to vector<16xf32>
    %299 = vector.shape_cast %298 : vector<16xf32> to vector<16x1xf32>
    %cst_124 = arith.constant 3.200000e+01 : f32
    %300 = vector.broadcast %cst_124 : f32 to vector<16x1xf32>
    %301 = arith.divf %299, %300 : vector<16x1xf32>
    %302 = vector.broadcast %301 : vector<16x1xf32> to vector<16x32xf32>
    %303 = arith.subf %293, %302 : vector<16x32xf32>
    %304 = arith.mulf %303, %303 : vector<16x32xf32>
    %cst_125 = arith.constant dense<0.000000e+00> : vector<16xf32>
    %305 = vector.multi_reduction <add>, %304, %cst_125 [1] : vector<16x32xf32> to vector<16xf32>
    %306 = vector.shape_cast %305 : vector<16xf32> to vector<16x1xf32>
    %cst_126 = arith.constant 3.200000e+01 : f32
    %307 = vector.broadcast %cst_126 : f32 to vector<16x1xf32>
    %308 = arith.divf %306, %307 : vector<16x1xf32>
    %309 = vector.broadcast %301 : vector<16x1xf32> to vector<16x32xf32>
    %310 = arith.subf %293, %309 : vector<16x32xf32>
    %cst_127 = arith.constant 9.99999974E-6 : f32
    %311 = vector.broadcast %cst_127 : f32 to vector<16x1xf32>
    %312 = arith.addf %308, %311 : vector<16x1xf32>
    %313 = math.rsqrt %312 : vector<16x1xf32>
    %314 = vector.broadcast %313 : vector<16x1xf32> to vector<16x32xf32>
    %315 = arith.mulf %310, %314 : vector<16x32xf32>
    %316 = vector.broadcast %295 : vector<1x32xf32> to vector<16x32xf32>
    %317 = arith.mulf %315, %316 : vector<16x32xf32>
    %318 = vector.broadcast %297 : vector<1x32xf32> to vector<16x32xf32>
    %319 = arith.addf %317, %318 : vector<16x32xf32>
    %320 = arith.truncf %319 : vector<16x32xf32> to vector<16x32xbf16>
    %c1_128 = arith.constant 1 : index
    %c0_129 = arith.constant 0 : index
    %c0_130 = arith.constant 0 : index
    %321 = vector.load %arg12[%c1_128, %c0_129, %c0_130] : memref<2x32x64xbf16, #tpu.memory_space<vmem>>, vector<1x32x64xbf16>
    %322 = vector.shape_cast %321 : vector<1x32x64xbf16> to vector<32x64xbf16>
    %cst_131 = arith.constant dense<0.000000e+00> : vector<16x64xf32>
    %323 = tpu.matmul %320, %322, %cst_131 {dimension_numbers = #tpu.dot_dimension_numbers<[1], [0], [0], [1], [0, 0, 1, 1], [], []>} : vector<16x32xbf16>, vector<32x64xbf16>, vector<16x64xf32> -> vector<16x64xf32>
    %c1_132 = arith.constant 1 : index
    %c0_133 = arith.constant 0 : index
    %c0_134 = arith.constant 0 : index
    %324 = vector.load %arg13[%c1_132, %c0_133, %c0_134] : memref<2x1x64xf32, #tpu.memory_space<vmem>>, vector<1x1x64xf32>
    %325 = vector.shape_cast %324 : vector<1x1x64xf32> to vector<1x64xf32>
    %326 = vector.broadcast %325 : vector<1x64xf32> to vector<16x64xf32>
    %327 = arith.addf %323, %326 : vector<16x64xf32>
    %328 = arith.mulf %327, %327 : vector<16x64xf32>
    %329 = arith.mulf %327, %328 : vector<16x64xf32>
    %cst_135 = arith.constant 4.471500e-02 : f32
    %330 = vector.broadcast %cst_135 : f32 to vector<16x64xf32>
    %331 = arith.mulf %330, %329 : vector<16x64xf32>
    %332 = arith.addf %327, %331 : vector<16x64xf32>
    %cst_136 = arith.constant 0.797884583 : f32
    %333 = vector.broadcast %cst_136 : f32 to vector<16x64xf32>
    %334 = arith.mulf %333, %332 : vector<16x64xf32>
    %335 = math.tanh %334 : vector<16x64xf32>
    %cst_137 = arith.constant 1.000000e+00 : f32
    %336 = vector.broadcast %cst_137 : f32 to vector<16x64xf32>
    %337 = arith.addf %336, %335 : vector<16x64xf32>
    %cst_138 = arith.constant 5.000000e-01 : f32
    %338 = vector.broadcast %cst_138 : f32 to vector<16x64xf32>
    %339 = arith.mulf %338, %337 : vector<16x64xf32>
    %340 = arith.mulf %327, %339 : vector<16x64xf32>
    %341 = arith.truncf %340 : vector<16x64xf32> to vector<16x64xbf16>
    %c1_139 = arith.constant 1 : index
    %c0_140 = arith.constant 0 : index
    %c0_141 = arith.constant 0 : index
    %342 = vector.load %arg14[%c1_139, %c0_140, %c0_141] : memref<2x64x32xbf16, #tpu.memory_space<vmem>>, vector<1x64x32xbf16>
    %343 = vector.shape_cast %342 : vector<1x64x32xbf16> to vector<64x32xbf16>
    %cst_142 = arith.constant dense<0.000000e+00> : vector<16x32xf32>
    %344 = tpu.matmul %341, %343, %cst_142 {dimension_numbers = #tpu.dot_dimension_numbers<[1], [0], [0], [1], [0, 0, 1, 1], [], []>} : vector<16x64xbf16>, vector<64x32xbf16>, vector<16x32xf32> -> vector<16x32xf32>
    %c1_143 = arith.constant 1 : index
    %c0_144 = arith.constant 0 : index
    %c0_145 = arith.constant 0 : index
    %345 = vector.load %arg15[%c1_143, %c0_144, %c0_145] : memref<2x1x32xf32, #tpu.memory_space<vmem>>, vector<1x1x32xf32>
    %346 = vector.shape_cast %345 : vector<1x1x32xf32> to vector<1x32xf32>
    %347 = vector.broadcast %346 : vector<1x32xf32> to vector<16x32xf32>
    %348 = arith.addf %344, %347 : vector<16x32xf32>
    %349 = arith.addf %348, %319 : vector<16x32xf32>
    %c1_146 = arith.constant 1 : index
    %c0_147 = arith.constant 0 : index
    %c0_148 = arith.constant 0 : index
    %350 = vector.load %arg16[%c1_146, %c0_147, %c0_148] : memref<2x1x32xf32, #tpu.memory_space<vmem>>, vector<1x1x32xf32>
    %351 = vector.shape_cast %350 : vector<1x1x32xf32> to vector<1x32xf32>
    %c1_149 = arith.constant 1 : index
    %c0_150 = arith.constant 0 : index
    %c0_151 = arith.constant 0 : index
    %352 = vector.load %arg17[%c1_149, %c0_150, %c0_151] : memref<2x1x32xf32, #tpu.memory_space<vmem>>, vector<1x1x32xf32>
    %353 = vector.shape_cast %352 : vector<1x1x32xf32> to vector<1x32xf32>
    %cst_152 = arith.constant dense<0.000000e+00> : vector<16xf32>
    %354 = vector.multi_reduction <add>, %349, %cst_152 [1] : vector<16x32xf32> to vector<16xf32>
    %355 = vector.shape_cast %354 : vector<16xf32> to vector<16x1xf32>
    %cst_153 = arith.constant 3.200000e+01 : f32
    %356 = vector.broadcast %cst_153 : f32 to vector<16x1xf32>
    %357 = arith.divf %355, %356 : vector<16x1xf32>
    %358 = vector.broadcast %357 : vector<16x1xf32> to vector<16x32xf32>
    %359 = arith.subf %349, %358 : vector<16x32xf32>
    %360 = arith.mulf %359, %359 : vector<16x32xf32>
    %cst_154 = arith.constant dense<0.000000e+00> : vector<16xf32>
    %361 = vector.multi_reduction <add>, %360, %cst_154 [1] : vector<16x32xf32> to vector<16xf32>
    %362 = vector.shape_cast %361 : vector<16xf32> to vector<16x1xf32>
    %cst_155 = arith.constant 3.200000e+01 : f32
    %363 = vector.broadcast %cst_155 : f32 to vector<16x1xf32>
    %364 = arith.divf %362, %363 : vector<16x1xf32>
    %365 = vector.broadcast %357 : vector<16x1xf32> to vector<16x32xf32>
    %366 = arith.subf %349, %365 : vector<16x32xf32>
    %cst_156 = arith.constant 9.99999974E-6 : f32
    %367 = vector.broadcast %cst_156 : f32 to vector<16x1xf32>
    %368 = arith.addf %364, %367 : vector<16x1xf32>
    %369 = math.rsqrt %368 : vector<16x1xf32>
    %370 = vector.broadcast %369 : vector<16x1xf32> to vector<16x32xf32>
    %371 = arith.mulf %366, %370 : vector<16x32xf32>
    %372 = vector.broadcast %351 : vector<1x32xf32> to vector<16x32xf32>
    %373 = arith.mulf %371, %372 : vector<16x32xf32>
    %374 = vector.broadcast %353 : vector<1x32xf32> to vector<16x32xf32>
    %375 = arith.addf %373, %374 : vector<16x32xf32>
    %376 = vector.extract_strided_slice %375 {offsets = [0, 0], sizes = [1, 32], strides = [1, 1]} : vector<16x32xf32> to vector<1x32xf32>
    %377 = vector.extract_strided_slice %375 {offsets = [8, 0], sizes = [1, 32], strides = [1, 1]} : vector<16x32xf32> to vector<1x32xf32>
    %378 = tpu.concatenate %376, %377 in 0 : vector<1x32xf32>, vector<1x32xf32> -> vector<2x32xf32>
    %379 = arith.truncf %378 : vector<2x32xf32> to vector<2x32xbf16>
    %c0_157 = arith.constant 0 : index
    %c0_158 = arith.constant 0 : index
    %380 = vector.load %arg18[%c0_157, %c0_158] : memref<32x128xbf16, #tpu.memory_space<vmem>>, vector<32x128xbf16>
    %cst_159 = arith.constant dense<0.000000e+00> : vector<2x128xf32>
    %381 = tpu.matmul %379, %380, %cst_159 {dimension_numbers = #tpu.dot_dimension_numbers<[1], [0], [0], [1], [0, 0, 1, 1], [], []>} : vector<2x32xbf16>, vector<32x128xbf16>, vector<2x128xf32> -> vector<2x128xf32>
    %c0_160 = arith.constant 0 : index
    %c0_161 = arith.constant 0 : index
    %382 = vector.load %arg19[%c0_160, %c0_161] : memref<1x128xf32, #tpu.memory_space<vmem>>, vector<1x128xf32>
    %383 = vector.broadcast %382 : vector<1x128xf32> to vector<2x128xf32>
    %384 = arith.addf %381, %383 : vector<2x128xf32>
    %c0_162 = arith.constant 0 : index
    %c0_163 = arith.constant 0 : index
    %385 = vector.load %arg20[%c0_162, %c0_163] : memref<2x128xf32, #tpu.memory_space<vmem>>, vector<2x128xf32>
    tpu.vector_store %arg20[%c0_162, %c0_163], %384 {strides = array<i32>} : memref<2x128xf32, #tpu.memory_space<vmem>>, vector<2x128xf32>,
    return
  }
}

</mosaic_0001>

<llo_original>
// kernel: phobert_classifier_forward.1
$region0: #{phobert_classifier_forward.1}
  #allocation0 [shape = 'u32[]', space=smem, size = 0x4, offset = 0x4, fixed_abs, tag = 'smem constant byte address 0x4 - core index']
  #allocation1 [shape = 'u32[144,128]{1,0:T(1,128)}', space=vmem, size = 0x12000, scoped, tag = 'internal scratch']
  %s0 = inlined_call_operand.vmem [shape: f32[16,32], index: 0, kind: input, shape index: {}]
  %s1 = inlined_call_operand.vmem [shape: f32[16,1], index: 1, kind: input, shape index: {}]
  %s2 = inlined_call_operand.vmem [shape: f32[1,16], index: 2, kind: input, shape index: {}]
  %s3 = inlined_call_operand.vmem [shape: f32[1,16], index: 3, kind: input, shape index: {}]
  %s4 = inlined_call_operand.vmem [shape: f32[1,32], index: 4, kind: input, shape index: {}]
  %s5 = inlined_call_operand.vmem [shape: f32[1,32], index: 5, kind: input, shape index: {}]
  %s6 = inlined_call_operand.vmem [shape: bf16[2,32,96], index: 6, kind: input, shape index: {}]
  %s7 = inlined_call_operand.vmem [shape: f32[2,1,96], index: 7, kind: input, shape index: {}]
  %s8 = inlined_call_operand.vmem [shape: bf16[2,32,32], index: 8, kind: input, shape index: {}]
  %s9 = inlined_call_operand.vmem [shape: f32[2,1,32], index: 9, kind: input, shape index: {}]
  %s10 = inlined_call_operand.vmem [shape: f32[2,1,32], index: 10, kind: input, shape index: {}]
  %s11 = inlined_call_operand.vmem [shape: f32[2,1,32], index: 11, kind: input, shape index: {}]
  %s12 = inlined_call_operand.vmem [shape: bf16[2,32,64], index: 12, kind: input, shape index: {}]
  %s13 = inlined_call_operand.vmem [shape: f32[2,1,64], index: 13, kind: input, shape index: {}]
  %s14 = inlined_call_operand.vmem [shape: bf16[2,64,32], index: 14, kind: input, shape index: {}]
  %s15 = inlined_call_operand.vmem [shape: f32[2,1,32], index: 15, kind: input, shape index: {}]
  %s16 = inlined_call_operand.vmem [shape: f32[2,1,32], index: 16, kind: input, shape index: {}]
  %s17 = inlined_call_operand.vmem [shape: f32[2,1,32], index: 17, kind: input, shape index: {}]
  %s18 = inlined_call_operand.vmem [shape: bf16[32,128], index: 18, kind: input, shape index: {}]
  %s19 = inlined_call_operand.vmem [shape: f32[1,128], index: 19, kind: input, shape index: {}]
  %s20 = inlined_call_operand.hbm [shape: f32[2,128], index: 20, kind: output, shape index: {}]
  %s21 = sld [smem:[#allocation0]]
  $region90: #{phobert_classifier_forward.1} parent=0
    _
  %s23 = ssub.s32 1, %s21
  %s24 = scalar_select 0, %s23, %s21
  $region1: #{phobert_classifier_forward.1} parent=0
    #allocation2 [shape = 'u8[1024]{0}', space=vmem, size = 0x400, scoped, tag = 'output window, operand 0, single buffered']
    #allocation3 [shape = 's32[1]{0}', space=sflag, size = 0x4, scoped, tag = 'scoped memory for phobert_classifier_forward.1']
    %25 = vsyncpa [#allocation3], 0
    // Predicated region
    $region2: #{phobert_classifier_forward.1} parent=1 // pred_check
      _
    $region3: #{phobert_classifier_forward.1} parent=1 // pred_check_branch
      %27 = sbr.rel (0) target = $region5
    $region4: #{phobert_classifier_forward.1} parent=1 // pred_region
      _
    $region5: #{phobert_classifier_forward.1} parent=1 // pred_fallthru
      _
    // Predicated region
    $region6: #{phobert_classifier_forward.1} parent=1 // pred_check
      _
    $region7: #{phobert_classifier_forward.1} parent=1 // pred_check_branch
      %29 = sbr.rel (0) target = $region9
    $region8: #{phobert_classifier_forward.1} parent=1 // pred_region
      _
    $region9: #{phobert_classifier_forward.1} parent=1 // pred_fallthru
      _
    // Predicated region
    $region10: #{phobert_classifier_forward.1} parent=1 // pred_check
      _
    $region11: #{phobert_classifier_forward.1} parent=1 // pred_check_branch
      %31 = sbr.rel (0) target = $region13
    $region12: #{phobert_classifier_forward.1} parent=1 // pred_region
      _
    $region13: #{phobert_classifier_forward.1} parent=1 // pred_fallthru
      _
    // Predicated region
    $region14: #{phobert_classifier_forward.1} parent=1 // pred_check
      _
    $region15: #{phobert_classifier_forward.1} parent=1 // pred_check_branch
      %33 = sbr.rel (0) target = $region17
    $region16: #{phobert_classifier_forward.1} parent=1 // pred_region
      _
    $region17: #{phobert_classifier_forward.1} parent=1 // pred_fallthru
      _
    // Predicated region
    $region18: #{phobert_classifier_forward.1} parent=1 // pred_check
      _
    $region19: #{phobert_classifier_forward.1} parent=1 // pred_check_branch
      %35 = sbr.rel (0) target = $region21
    $region20: #{phobert_classifier_forward.1} parent=1 // pred_region
      _
    $region21: #{phobert_classifier_forward.1} parent=1 // pred_fallthru
      _
    // Predicated region
    $region22: #{phobert_classifier_forward.1} parent=1 // pred_check
      _
    $region23: #{phobert_classifier_forward.1} parent=1 // pred_check_branch
      %37 = sbr.rel (0) target = $region25
    $region24: #{phobert_classifier_forward.1} parent=1 // pred_region
      _
    $region25: #{phobert_classifier_forward.1} parent=1 // pred_fallthru
      _
    // Predicated region
    $region26: #{phobert_classifier_forward.1} parent=1 // pred_check
      _
    $region27: #{phobert_classifier_forward.1} parent=1 // pred_check_branch
      %39 = sbr.rel (0) target = $region29
    $region28: #{phobert_classifier_forward.1} parent=1 // pred_region
      _
    $region29: #{phobert_classifier_forward.1} parent=1 // pred_fallthru
      _
    // Predicated region
    $region30: #{phobert_classifier_forward.1} parent=1 // pred_check
      _
    $region31: #{phobert_classifier_forward.1} parent=1 // pred_check_branch
      %41 = sbr.rel (0) target = $region33
    $region32: #{phobert_classifier_forward.1} parent=1 // pred_region
      _
    $region33: #{phobert_classifier_forward.1} parent=1 // pred_fallthru
      _
    // Predicated region
    $region34: #{phobert_classifier_forward.1} parent=1 // pred_check
      _
    $region35: #{phobert_classifier_forward.1} parent=1 // pred_check_branch
      %43 = sbr.rel (0) target = $region37
    $region36: #{phobert_classifier_forward.1} parent=1 // pred_region
      _
    $region37: #{phobert_classifier_forward.1} parent=1 // pred_fallthru
      _
    // Predicated region
    $region38: #{phobert_classifier_forward.1} parent=1 // pred_check
      _
    $region39: #{phobert_classifier_forward.1} parent=1 // pred_check_branch
      %45 = sbr.rel (0) target = $region41
    $region40: #{phobert_classifier_forward.1} parent=1 // pred_region
      _
    $region41: #{phobert_classifier_forward.1} parent=1 // pred_fallthru
      _
    // Predicated region
    $region42: #{phobert_classifier_forward.1} parent=1 // pred_check
      _
    $region43: #{phobert_classifier_forward.1} parent=1 // pred_check_branch
      %47 = sbr.rel (0) target = $region45
    $region44: #{phobert_classifier_forward.1} parent=1 // pred_region
      _
    $region45: #{phobert_classifier_forward.1} parent=1 // pred_fallthru
      _
    // Predicated region
    $region46: #{phobert_classifier_forward.1} parent=1 // pred_check
      _
    $region47: #{phobert_classifier_forward.1} parent=1 // pred_check_branch
      %49 = sbr.rel (0) target = $region49
    $region48: #{phobert_classifier_forward.1} parent=1 // pred_region
      _
    $region49: #{phobert_classifier_forward.1} parent=1 // pred_fallthru
      _
    // Predicated region
    $region50: #{phobert_classifier_forward.1} parent=1 // pred_check
      _
    $region51: #{phobert_classifier_forward.1} parent=1 // pred_check_branch
      %51 = sbr.rel (0) target = $region53
    $region52: #{phobert_classifier_forward.1} parent=1 // pred_region
      _
    $region53: #{phobert_classifier_forward.1} parent=1 // pred_fallthru
      _
    // Predicated region
    $region54: #{phobert_classifier_forward.1} parent=1 // pred_check
      _
    $region55: #{phobert_classifier_forward.1} parent=1 // pred_check_branch
      %53 = sbr.rel (0) target = $region57
    $region56: #{phobert_classifier_forward.1} parent=1 // pred_region
      _
    $region57: #{phobert_classifier_forward.1} parent=1 // pred_fallthru
      _
    // Predicated region
    $region58: #{phobert_classifier_forward.1} parent=1 // pred_check
      _
    $region59: #{phobert_classifier_forward.1} parent=1 // pred_check_branch
      %55 = sbr.rel (0) target = $region61
    $region60: #{phobert_classifier_forward.1} parent=1 // pred_region
      _
    $region61: #{phobert_classifier_forward.1} parent=1 // pred_fallthru
      _
    // Predicated region
    $region62: #{phobert_classifier_forward.1} parent=1 // pred_check
      _
    $region63: #{phobert_classifier_forward.1} parent=1 // pred_check_branch
      %57 = sbr.rel (0) target = $region65
    $region64: #{phobert_classifier_forward.1} parent=1 // pred_region
      _
    $region65: #{phobert_classifier_forward.1} parent=1 // pred_fallthru
      _
    // Predicated region
    $region66: #{phobert_classifier_forward.1} parent=1 // pred_check
      _
    $region67: #{phobert_classifier_forward.1} parent=1 // pred_check_branch
      %59 = sbr.rel (0) target = $region69
    $region68: #{phobert_classifier_forward.1} parent=1 // pred_region
      _
    $region69: #{phobert_classifier_forward.1} parent=1 // pred_fallthru
      _
    // Predicated region
    $region70: #{phobert_classifier_forward.1} parent=1 // pred_check
      _
    $region71: #{phobert_classifier_forward.1} parent=1 // pred_check_branch
      %61 = sbr.rel (0) target = $region73
    $region72: #{phobert_classifier_forward.1} parent=1 // pred_region
      _
    $region73: #{phobert_classifier_forward.1} parent=1 // pred_fallthru
      _
    // Predicated region
    $region74: #{phobert_classifier_forward.1} parent=1 // pred_check
      _
    $region75: #{phobert_classifier_forward.1} parent=1 // pred_check_branch
      %63 = sbr.rel (0) target = $region77
    $region76: #{phobert_classifier_forward.1} parent=1 // pred_region
      _
    $region77: #{phobert_classifier_forward.1} parent=1 // pred_fallthru
      _
    // Predicated region
    $region78: #{phobert_classifier_forward.1} parent=1 // pred_check
      _
    $region79: #{phobert_classifier_forward.1} parent=1 // pred_check_branch
      %65 = sbr.rel (0) target = $region81
    $region80: #{phobert_classifier_forward.1} parent=1 // pred_region
      _
    $region81: #{phobert_classifier_forward.1} parent=1 // pred_fallthru
      _
    %v67 = vld [vmem:[%s1] sm:$0xff]
    %v68 = vld [vmem:[%s1 + $0x8] sm:$0xff]
    %v69 = vld [vmem:[%s2] sm:$0x1]
    %71 = vset.pattern.permute.xlu0 0
    %72 = vperm.xlu0 %71, %v67
    %v73 = vpop.permute.xlu0 %72
    %76 = vset.pattern.permute.xlu0 0
    %77 = vperm.xlu0 %76, %v68
    %v78 = vpop.permute.xlu0 %77
    %v81 = vlaneseq
    %v82 = vshrl.u32 %v81, 7
    %v83 = vsub.s32 0, %v82
    %v84 = vrot.slane %v69, %v83
    %vm86 = vcmp.eq.f32.partialorder %v73, %v84
    %vm87 = vcmp.eq.f32.partialorder %v78, %v84
    %v88 = vld [vmem:[%s3] sm:$0x1]
    %vm89 = vcmp.gt.f32.partialorder %v88, 0.5
    %v90 = vsel %vm89, 1, 0
    %v91 = vlaneseq
    %v92 = vshrl.u32 %v91, 7
    %v93 = vsub.s32 0, %v92
    %v94 = vrot.slane %v90, %v93
    %vm95 = vcmp.eq.s32.totalorder %v94, 1
    %vm96 = vmand %vm86, %vm95
    %vm97 = vmand %vm87, %vm95
    %v98 = vsel %vm96, 0.0, -1e+09
    %v99 = vsel %vm97, 0.0, -1e+09
    %v100 = vld [vmem:[%s0] sm:$0xff]
    %v101 = vld [vmem:[%s0 + $0x8] sm:$0xff]
    %v102 = vld [vmem:[%s4] sm:$0x1]
    %v103 = vld [vmem:[%s5] sm:$0x1]
    %vm104 = vcmask 261120
    %v105 = vsel %vm104, %v100, 0.0
    %106 = vadd.xlane.f32.xlu0 %v105
    %v107 = vpop.xlane.xlu0 %106
    %v108 = vsel %vm104, %v101, 0.0
    %109 = vadd.xlane.f32.xlu0 %v108
    %v110 = vpop.xlane.xlu0 %109
    %v111 = vrcp.pop 32.0
    %v112 = vmul.f32 %v107, %v111
    %v113 = vmul.f32 %v110, %v111
    %v114 = vsub.f32 %v100, %v112
    %v115 = vsub.f32 %v101, %v113
    %v116 = vmul.f32 %v114, %v114
    %v117 = vmul.f32 %v115, %v115
    %v118 = vsel %vm104, %v116, 0.0
    %119 = vadd.xlane.f32.xlu0 %v118
    %v120 = vpop.xlane.xlu0 %119
    %v121 = vsel %vm104, %v117, 0.0
    %122 = vadd.xlane.f32.xlu0 %v121
    %v123 = vpop.xlane.xlu0 %122
    %v124 = vmul.f32 %v120, %v111
    %v125 = vmul.f32 %v123, %v111
    %v126 = vadd.f32 %v124, 1e-05
    %v127 = vadd.f32 %v125, 1e-05
    %v128 = vrsqrt.pop %v126
    %v129 = vrsqrt.pop %v127
    %v130 = vmul.f32 %v114, %v128
    %v131 = vmul.f32 %v115, %v129
    %v133 = vlaneseq
    %v134 = vshrl.u32 %v133, 7
    %v135 = vsub.s32 0, %v134
    %v136 = vrot.slane %v102, %v135
    %v138 = vmul.f32 %v130, %v136
    %v139 = vmul.f32 %v131, %v136
    %v141 = vlaneseq
    %v142 = vshrl.u32 %v141, 7
    %v143 = vsub.s32 0, %v142
    %v144 = vrot.slane %v103, %v143
    %v146 = vadd.f32 %v138, %v144
    %v147 = vadd.f32 %v139, %v144
    %v148 = vpack.c.bf16 %v147, %v146
    %v149 = vld [vmem:[%s6] sm:$0xf]
    %v150 = vld [vmem:[%s6 + $0x4] sm:$0xf]
    %v151 = vld [vmem:[%s6 + $0x8] sm:$0xf]
    %v152 = vld [vmem:[%s6 + $0xc] sm:$0xf]
    %v153 = vld [vmem:[%s7] sm:$0x1]
    %v155 = vlaneseq
    %v156 = vshrl.u32 %v155, 7
    %v157 = vsub.s32 0, %v156
    %v158 = vrot.slane %v153, %v157
    %v164 = vunpack.c.l.b16 %v149
    %v165 = vunpack.c.l.b16 %v150
    %v166 = vunpack.c.l.b16 %v151
    %v167 = vunpack.c.l.b16 %v152
    %v168 = vpack.c.b16 %v165, %v164
    %v169 = vpack.c.b16 %v167, %v166
    %v173 = vsel %vm104, %v148, 0
    %175 = vmatprep.subr.bf16.mxu0 0
    %176 = vmatpush1.bf16.msra.mxu0 %v168
    %177 = vmatprep.subr.bf16.mxu0 0
    %178 = vmatpush1.bf16.msra.mxu0 %v169
    %179 = vmatprep.subr.bf16.mxu0 0
    %180 = vmatpush1.bf16.msra.mxu0 0
    %181 = vmatprep.subr.bf16.mxu0 0
    %182 = vmatpush1.bf16.msra.mxu0 0
    %183 = vmatprep.subr.bf16.mxu0 0
    %184 = vmatpush1.bf16.msra.mxu0 0
    %185 = vmatprep.subr.bf16.mxu0 0
    %186 = vmatpush1.bf16.msra.mxu0 0
    %187 = vmatprep.subr.bf16.mxu0 0
    %188 = vmatpush1.bf16.msra.mxu0 0
    %189 = vmatprep.subr.bf16.mxu0 0
    %190 = vmatpush1.bf16.msra.mxu0 0
    %191 = vmatprep.subr.bf16.mxu0 0
    %192 = vmatpush1.bf16.msra.mxu0 0
    %193 = vmatprep.subr.bf16.mxu0 0
    %194 = vmatpush1.bf16.msra.mxu0 0
    %195 = vmatprep.subr.bf16.mxu0 0
    %196 = vmatpush1.bf16.msra.mxu0 0
    %197 = vmatprep.subr.bf16.mxu0 0
    %198 = vmatpush1.bf16.msra.mxu0 0
    %199 = vmatprep.subr.bf16.mxu0 0
    %200 = vmatpush1.bf16.msra.mxu0 0
    %201 = vmatprep.subr.bf16.mxu0 0
    %202 = vmatpush1.bf16.msra.mxu0 0
    %203 = vmatprep.subr.bf16.mxu0 0
    %204 = vmatpush1.bf16.msra.mxu0 0
    %205 = vmatprep.subr.bf16.mxu0 0
    %206 = vmatpush1.bf16.msra.mxu0 0
    %207 = vmatprep.mubr.bf16.mxu0 0
    %208 = vmatmul.mubr.bf16.gmra.mrb[0].mxu0 %v173
    %v209 = vpop.f32.mrb[0].mxu0
    %v210 = vadd.f32 %v158, %v209
    %v211 = vpop.f32.mrb[0].mxu0
    %v212 = vpop.f32.mrb[0].mxu0
    %v213 = vadd.f32 %v158, %v212
    %v214 = vpop.f32.mrb[0].mxu0
    %215 = vdwg.mxu0
    %v216 = vpack.c.bf16 %v213, %v210
    %218 = vrot.lane.b32.xlu0 %v216, 96
    %v219 = vpop.permute.xlu0 %218
    %vm220 = vcmask 64512
    %v222 = vsel %vm220, %v216, 0
    %v225 = vsel %vm220, %v219, 0
    %227 = vmatprep.subr.bf16.mxu0 0
    %228 = vmatpush1.bf16.xpose.msra.mxu0 %v225
    %229 = vmatprep.subr.bf16.mxu0 0
    %230 = vmatpush1.bf16.xpose.msra.mxu0 0
    %231 = vmatprep.subr.bf16.mxu0 0
    %232 = vmatpush1.bf16.xpose.msra.mxu0 0
    %233 = vmatprep.subr.bf16.mxu0 0
    %234 = vmatpush1.bf16.xpose.msra.mxu0 0
    %235 = vmatprep.subr.bf16.mxu0 0
    %236 = vmatpush1.bf16.xpose.msra.mxu0 0
    %237 = vmatprep.subr.bf16.mxu0 0
    %238 = vmatpush1.bf16.xpose.msra.mxu0 0
    %239 = vmatprep.subr.bf16.mxu0 0
    %240 = vmatpush1.bf16.xpose.msra.mxu0 0
    %241 = vmatprep.subr.bf16.mxu0 0
    %242 = vmatpush1.bf16.xpose.msra.mxu0 0
    %243 = vmatprep.subr.bf16.mxu0 0
    %244 = vmatpush1.bf16.xpose.msra.mxu0 0
    %245 = vmatprep.subr.bf16.mxu0 0
    %246 = vmatpush1.bf16.xpose.msra.mxu0 0
    %247 = vmatprep.subr.bf16.mxu0 0
    %248 = vmatpush1.bf16.xpose.msra.mxu0 0
    %249 = vmatprep.subr.bf16.mxu0 0
    %250 = vmatpush1.bf16.xpose.msra.mxu0 0
    %251 = vmatprep.subr.bf16.mxu0 0
    %252 = vmatpush1.bf16.xpose.msra.mxu0 0
    %253 = vmatprep.subr.bf16.mxu0 0
    %254 = vmatpush1.bf16.xpose.msra.mxu0 0
    %255 = vmatprep.subr.bf16.mxu0 0
    %256 = vmatpush1.bf16.xpose.msra.mxu0 0
    %257 = vmatprep.subr.bf16.mxu0 0
    %258 = vmatpush1.bf16.xpose.msra.mxu0 0
    %259 = vmatprep.mubr.bf16.mxu0 0
    %260 = vmatmul.mubr.bf16.gmra.mrb[0].mxu0 %v222
    %v261 = vpop.f32.mrb[0].mxu0
    %v262 = vadd.f32 %v98, %v261
    %v263 = vpop.f32.mrb[0].mxu0
    %v264 = vpop.f32.mrb[0].mxu0
    %v265 = vadd.f32 %v99, %v264
    %v266 = vpop.f32.mrb[0].mxu0
    %267 = vdwg.mxu0
    %vm268 = vcmask 130048
    %v269 = vsel %vm268, %v262, -inf
    %270 = vmax.xlane.f32.xlu0 %v269
    %v271 = vpop.xlane.xlu0 %270
    %v272 = vsel %vm268, %v265, -inf
    %273 = vmax.xlane.f32.xlu0 %v272
    %v274 = vpop.xlane.xlu0 %273
    %v275 = vsub.f32 %v262, %v271
    %v276 = vsub.f32 %v265, %v274
    %v277 = vmul.f32 %v275, 1.442695
    %v278 = vpow.pop %v277
    %v279 = vmul.f32 %v276, 1.442695
    %v280 = vpow.pop %v279
    %v281 = vsel %vm268, %v278, 0.0
    %282 = vadd.xlane.f32.xlu0 %v281
    %v283 = vpop.xlane.xlu0 %282
    %v284 = vsel %vm268, %v280, 0.0
    %285 = vadd.xlane.f32.xlu0 %v284
    %v286 = vpop.xlane.xlu0 %285
    %v287 = vrcp.pop %v283
    %v288 = vrcp.pop %v286
    %v289 = vmul.f32 %v278, %v287
    %v290 = vmul.f32 %v280, %v288
    %v291 = vpack.c.bf16 %v290, %v289
    %292 = vrot.lane.b32.xlu0 %v216, 64
    %v293 = vpop.permute.xlu0 %292
    %v296 = vsel %vm268, %v291, 0
    %298 = vmatprep.subr.bf16.mxu0 0
    %299 = vmatpush1.bf16.msra.mxu0 %v293
    %300 = vmatprep.subr.bf16.mxu0 0
    %301 = vmatpush1.bf16.msra.mxu0 0
    %302 = vmatprep.subr.bf16.mxu0 0
    %303 = vmatpush1.bf16.msra.mxu0 0
    %304 = vmatprep.subr.bf16.mxu0 0
    %305 = vmatpush1.bf16.msra.mxu0 0
    %306 = vmatprep.subr.bf16.mxu0 0
    %307 = vmatpush1.bf16.msra.mxu0 0
    %308 = vmatprep.subr.bf16.mxu0 0
    %309 = vmatpush1.bf16.msra.mxu0 0
    %310 = vmatprep.subr.bf16.mxu0 0
    %311 = vmatpush1.bf16.msra.mxu0 0
    %312 = vmatprep.subr.bf16.mxu0 0
    %313 = vmatpush1.bf16.msra.mxu0 0
    %314 = vmatprep.subr.bf16.mxu0 0
    %315 = vmatpush1.bf16.msra.mxu0 0
    %316 = vmatprep.subr.bf16.mxu0 0
    %317 = vmatpush1.bf16.msra.mxu0 0
    %318 = vmatprep.subr.bf16.mxu0 0
    %319 = vmatpush1.bf16.msra.mxu0 0
    %320 = vmatprep.subr.bf16.mxu0 0
    %321 = vmatpush1.bf16.msra.mxu0 0
    %322 = vmatprep.subr.bf16.mxu0 0
    %323 = vmatpush1.bf16.msra.mxu0 0
    %324 = vmatprep.subr.bf16.mxu0 0
    %325 = vmatpush1.bf16.msra.mxu0 0
    %326 = vmatprep.subr.bf16.mxu0 0
    %327 = vmatpush1.bf16.msra.mxu0 0
    %328 = vmatprep.subr.bf16.mxu0 0
    %329 = vmatpush1.bf16.msra.mxu0 0
    %330 = vmatprep.mubr.bf16.mxu0 0
    %331 = vmatmul.mubr.bf16.gmra.mrb[0].mxu0 %v296
    %v332 = vpop.f32.mrb[0].mxu0
    %v333 = vadd.f32 0.0, %v332
    %v334 = vpop.f32.mrb[0].mxu0
    %v335 = vpop.f32.mrb[0].mxu0
    %v336 = vadd.f32 0.0, %v335
    %v337 = vpop.f32.mrb[0].mxu0
    %338 = vdwg.mxu0
    %339 = vrot.lane.b32.xlu0 %v216, 120
    %v340 = vpop.permute.xlu0 %339
    %341 = vrot.lane.b32.xlu0 %v216, 88
    %v342 = vpop.permute.xlu0 %341
    %v344 = vsel %vm220, %v340, 0
    %v347 = vsel %vm220, %v342, 0
    %349 = vmatprep.subr.bf16.mxu0 0
    %350 = vmatpush1.bf16.xpose.msra.mxu0 %v347
    %351 = vmatprep.subr.bf16.mxu0 0
    %352 = vmatpush1.bf16.xpose.msra.mxu0 0
    %353 = vmatprep.subr.bf16.mxu0 0
    %354 = vmatpush1.bf16.xpose.msra.mxu0 0
    %355 = vmatprep.subr.bf16.mxu0 0
    %356 = vmatpush1.bf16.xpose.msra.mxu0 0
    %357 = vmatprep.subr.bf16.mxu0 0
    %358 = vmatpush1.bf16.xpose.msra.mxu0 0
    %359 = vmatprep.subr.bf16.mxu0 0
    %360 = vmatpush1.bf16.xpose.msra.mxu0 0
    %361 = vmatprep.subr.bf16.mxu0 0
    %362 = vmatpush1.bf16.xpose.msra.mxu0 0
    %363 = vmatprep.subr.bf16.mxu0 0
    %364 = vmatpush1.bf16.xpose.msra.mxu0 0
    %365 = vmatprep.subr.bf16.mxu0 0
    %366 = vmatpush1.bf16.xpose.msra.mxu0 0
    %367 = vmatprep.subr.bf16.mxu0 0
    %368 = vmatpush1.bf16.xpose.msra.mxu0 0
    %369 = vmatprep.subr.bf16.mxu0 0
    %370 = vmatpush1.bf16.xpose.msra.mxu0 0
    %371 = vmatprep.subr.bf16.mxu0 0
    %372 = vmatpush1.bf16.xpose.msra.mxu0 0
    %373 = vmatprep.subr.bf16.mxu0 0
    %374 = vmatpush1.bf16.xpose.msra.mxu0 0
    %375 = vmatprep.subr.bf16.mxu0 0
    %376 = vmatpush1.bf16.xpose.msra.mxu0 0
    %377 = vmatprep.subr.bf16.mxu0 0
    %378 = vmatpush1.bf16.xpose.msra.mxu0 0
    %379 = vmatprep.subr.bf16.mxu0 0
    %380 = vmatpush1.bf16.xpose.msra.mxu0 0
    %381 = vmatprep.mubr.bf16.mxu0 0
    %382 = vmatmul.mubr.bf16.gmra.mrb[0].mxu0 %v344
    %v383 = vpop.f32.mrb[0].mxu0
    %v384 = vadd.f32 %v98, %v383
    %v385 = vpop.f32.mrb[0].mxu0
    %v386 = vpop.f32.mrb[0].mxu0
    %v387 = vadd.f32 %v99, %v386
    %v388 = vpop.f32.mrb[0].mxu0
    %389 = vdwg.mxu0
    %v390 = vsel %vm268, %v384, -inf
    %391 = vmax.xlane.f32.xlu0 %v390
    %v392 = vpop.xlane.xlu0 %391
    %v393 = vsel %vm268, %v387, -inf
    %394 = vmax.xlane.f32.xlu0 %v393
    %v395 = vpop.xlane.xlu0 %394
    %v396 = vsub.f32 %v384, %v392
    %v397 = vsub.f32 %v387, %v395
    %v398 = vmul.f32 %v396, 1.442695
    %v399 = vpow.pop %v398
    %v400 = vmul.f32 %v397, 1.442695
    %v401 = vpow.pop %v400
    %v402 = vsel %vm268, %v399, 0.0
    %403 = vadd.xlane.f32.xlu0 %v402
    %v404 = vpop.xlane.xlu0 %403
    %v405 = vsel %vm268, %v401, 0.0
    %406 = vadd.xlane.f32.xlu0 %v405
    %v407 = vpop.xlane.xlu0 %406
    %v408 = vrcp.pop %v404
    %v409 = vrcp.pop %v407
    %v410 = vmul.f32 %v399, %v408
    %v411 = vmul.f32 %v401, %v409
    %v412 = vpack.c.bf16 %v411, %v410
    %413 = vrot.lane.b32.xlu0 %v216, 56
    %v414 = vpop.permute.xlu0 %413
    %v417 = vsel %vm268, %v412, 0
    %419 = vmatprep.subr.bf16.mxu0 0
    %420 = vmatpush1.bf16.msra.mxu0 %v414
    %421 = vmatprep.subr.bf16.mxu0 0
    %422 = vmatpush1.bf16.msra.mxu0 0
    %423 = vmatprep.subr.bf16.mxu0 0
    %424 = vmatpush1.bf16.msra.mxu0 0
    %425 = vmatprep.subr.bf16.mxu0 0
    %426 = vmatpush1.bf16.msra.mxu0 0
    %427 = vmatprep.subr.bf16.mxu0 0
    %428 = vmatpush1.bf16.msra.mxu0 0
    %429 = vmatprep.subr.bf16.mxu0 0
    %430 = vmatpush1.bf16.msra.mxu0 0
    %431 = vmatprep.subr.bf16.mxu0 0
    %432 = vmatpush1.bf16.msra.mxu0 0
    %433 = vmatprep.subr.bf16.mxu0 0
    %434 = vmatpush1.bf16.msra.mxu0 0
    %435 = vmatprep.subr.bf16.mxu0 0
    %436 = vmatpush1.bf16.msra.mxu0 0
    %437 = vmatprep.subr.bf16.mxu0 0
    %438 = vmatpush1.bf16.msra.mxu0 0
    %439 = vmatprep.subr.bf16.mxu0 0
    %440 = vmatpush1.bf16.msra.mxu0 0
    %441 = vmatprep.subr.bf16.mxu0 0
    %442 = vmatpush1.bf16.msra.mxu0 0
    %443 = vmatprep.subr.bf16.mxu0 0
    %444 = vmatpush1.bf16.msra.mxu0 0
    %445 = vmatprep.subr.bf16.mxu0 0
    %446 = vmatpush1.bf16.msra.mxu0 0
    %447 = vmatprep.subr.bf16.mxu0 0
    %448 = vmatpush1.bf16.msra.mxu0 0
    %449 = vmatprep.subr.bf16.mxu0 0
    %450 = vmatpush1.bf16.msra.mxu0 0
    %451 = vmatprep.mubr.bf16.mxu0 0
    %452 = vmatmul.mubr.bf16.gmra.mrb[0].mxu0 %v417
    %v453 = vpop.f32.mrb[0].mxu0
    %v454 = vadd.f32 0.0, %v453
    %v455 = vpop.f32.mrb[0].mxu0
    %v456 = vpop.f32.mrb[0].mxu0
    %v457 = vadd.f32 0.0, %v456
    %v458 = vpop.f32.mrb[0].mxu0
    %459 = vdwg.mxu0
    %460 = vrot.lane.b32.xlu0 %v216, 112
    %v461 = vpop.permute.xlu0 %460
    %462 = vrot.lane.b32.xlu0 %v216, 80
    %v463 = vpop.permute.xlu0 %462
    %v465 = vsel %vm220, %v461, 0
    %v468 = vsel %vm220, %v463, 0
    %470 = vmatprep.subr.bf16.mxu0 0
    %471 = vmatpush1.bf16.xpose.msra.mxu0 %v468
    %472 = vmatprep.subr.bf16.mxu0 0
    %473 = vmatpush1.bf16.xpose.msra.mxu0 0
    %474 = vmatprep.subr.bf16.mxu0 0
    %475 = vmatpush1.bf16.xpose.msra.mxu0 0
    %476 = vmatprep.subr.bf16.mxu0 0
    %477 = vmatpush1.bf16.xpose.msra.mxu0 0
    %478 = vmatprep.subr.bf16.mxu0 0
    %479 = vmatpush1.bf16.xpose.msra.mxu0 0
    %480 = vmatprep.subr.bf16.mxu0 0
    %481 = vmatpush1.bf16.xpose.msra.mxu0 0
    %482 = vmatprep.subr.bf16.mxu0 0
    %483 = vmatpush1.bf16.xpose.msra.mxu0 0
    %484 = vmatprep.subr.bf16.mxu0 0
    %485 = vmatpush1.bf16.xpose.msra.mxu0 0
    %486 = vmatprep.subr.bf16.mxu0 0
    %487 = vmatpush1.bf16.xpose.msra.mxu0 0
    %488 = vmatprep.subr.bf16.mxu0 0
    %489 = vmatpush1.bf16.xpose.msra.mxu0 0
    %490 = vmatprep.subr.bf16.mxu0 0
    %491 = vmatpush1.bf16.xpose.msra.mxu0 0
    %492 = vmatprep.subr.bf16.mxu0 0
    %493 = vmatpush1.bf16.xpose.msra.mxu0 0
    %494 = vmatprep.subr.bf16.mxu0 0
    %495 = vmatpush1.bf16.xpose.msra.mxu0 0
    %496 = vmatprep.subr.bf16.mxu0 0
    %497 = vmatpush1.bf16.xpose.msra.mxu0 0
    %498 = vmatprep.subr.bf16.mxu0 0
    %499 = vmatpush1.bf16.xpose.msra.mxu0 0
    %500 = vmatprep.subr.bf16.mxu0 0
    %501 = vmatpush1.bf16.xpose.msra.mxu0 0
    %502 = vmatprep.mubr.bf16.mxu0 0
    %503 = vmatmul.mubr.bf16.gmra.mrb[0].mxu0 %v465
    %v504 = vpop.f32.mrb[0].mxu0
    %v505 = vadd.f32 %v98, %v504
    %v506 = vpop.f32.mrb[0].mxu0
    %v507 = vpop.f32.mrb[0].mxu0
    %v508 = vadd.f32 %v99, %v507
    %v509 = vpop.f32.mrb[0].mxu0
    %510 = vdwg.mxu0
    %v511 = vsel %vm268, %v505, -inf
    %512 = vmax.xlane.f32.xlu0 %v511
    %v513 = vpop.xlane.xlu0 %512
    %v514 = vsel %vm268, %v508, -inf
    %515 = vmax.xlane.f32.xlu0 %v514
    %v516 = vpop.xlane.xlu0 %515
    %v517 = vsub.f32 %v505, %v513
    %v518 = vsub.f32 %v508, %v516
    %v519 = vmul.f32 %v517, 1.442695
    %v520 = vpow.pop %v519
    %v521 = vmul.f32 %v518, 1.442695
    %v522 = vpow.pop %v521
    %v523 = vsel %vm268, %v520, 0.0
    %524 = vadd.xlane.f32.xlu0 %v523
    %v525 = vpop.xlane.xlu0 %524
    %v526 = vsel %vm268, %v522, 0.0
    %527 = vadd.xlane.f32.xlu0 %v526
    %v528 = vpop.xlane.xlu0 %527
    %v529 = vrcp.pop %v525
    %v530 = vrcp.pop %v528
    %v531 = vmul.f32 %v520, %v529
    %v532 = vmul.f32 %v522, %v530
    %v533 = vpack.c.bf16 %v532, %v531
    %534 = vrot.lane.b32.xlu0 %v216, 48
    %v535 = vpop.permute.xlu0 %534
    %v538 = vsel %vm268, %v533, 0
    %540 = vmatprep.subr.bf16.mxu0 0
    %541 = vmatpush1.bf16.msra.mxu0 %v535
    %542 = vmatprep.subr.bf16.mxu0 0
    %543 = vmatpush1.bf16.msra.mxu0 0
    %544 = vmatprep.subr.bf16.mxu0 0
    %545 = vmatpush1.bf16.msra.mxu0 0
    %546 = vmatprep.subr.bf16.mxu0 0
    %547 = vmatpush1.bf16.msra.mxu0 0
    %548 = vmatprep.subr.bf16.mxu0 0
    %549 = vmatpush1.bf16.msra.mxu0 0
    %550 = vmatprep.subr.bf16.mxu0 0
    %551 = vmatpush1.bf16.msra.mxu0 0
    %552 = vmatprep.subr.bf16.mxu0 0
    %553 = vmatpush1.bf16.msra.mxu0 0
    %554 = vmatprep.subr.bf16.mxu0 0
    %555 = vmatpush1.bf16.msra.mxu0 0
    %556 = vmatprep.subr.bf16.mxu0 0
    %557 = vmatpush1.bf16.msra.mxu0 0
    %558 = vmatprep.subr.bf16.mxu0 0
    %559 = vmatpush1.bf16.msra.mxu0 0
    %560 = vmatprep.subr.bf16.mxu0 0
    %561 = vmatpush1.bf16.msra.mxu0 0
    %562 = vmatprep.subr.bf16.mxu0 0
    %563 = vmatpush1.bf16.msra.mxu0 0
    %564 = vmatprep.subr.bf16.mxu0 0
    %565 = vmatpush1.bf16.msra.mxu0 0
    %566 = vmatprep.subr.bf16.mxu0 0
    %567 = vmatpush1.bf16.msra.mxu0 0
    %568 = vmatprep.subr.bf16.mxu0 0
    %569 = vmatpush1.bf16.msra.mxu0 0
    %570 = vmatprep.subr.bf16.mxu0 0
    %571 = vmatpush1.bf16.msra.mxu0 0
    %572 = vmatprep.mubr.bf16.mxu0 0
    %573 = vmatmul.mubr.bf16.gmra.mrb[0].mxu0 %v538
    %v574 = vpop.f32.mrb[0].mxu0
    %v575 = vadd.f32 0.0, %v574
    %v576 = vpop.f32.mrb[0].mxu0
    %v577 = vpop.f32.mrb[0].mxu0
    %v578 = vadd.f32 0.0, %v577
    %v579 = vpop.f32.mrb[0].mxu0
    %580 = vdwg.mxu0
    %581 = vrot.lane.b32.xlu0 %v216, 104
    %v582 = vpop.permute.xlu0 %581
    %583 = vrot.lane.b32.xlu0 %v216, 72
    %v584 = vpop.permute.xlu0 %583
    %v586 = vsel %vm220, %v582, 0
    %v589 = vsel %vm220, %v584, 0
    %591 = vmatprep.subr.bf16.mxu0 0
    %592 = vmatpush1.bf16.xpose.msra.mxu0 %v589
    %593 = vmatprep.subr.bf16.mxu0 0
    %594 = vmatpush1.bf16.xpose.msra.mxu0 0
    %595 = vmatprep.subr.bf16.mxu0 0
    %596 = vmatpush1.bf16.xpose.msra.mxu0 0
    %597 = vmatprep.subr.bf16.mxu0 0
    %598 = vmatpush1.bf16.xpose.msra.mxu0 0
    %599 = vmatprep.subr.bf16.mxu0 0
    %600 = vmatpush1.bf16.xpose.msra.mxu0 0
    %601 = vmatprep.subr.bf16.mxu0 0
    %602 = vmatpush1.bf16.xpose.msra.mxu0 0
    %603 = vmatprep.subr.bf16.mxu0 0
    %604 = vmatpush1.bf16.xpose.msra.mxu0 0
    %605 = vmatprep.subr.bf16.mxu0 0
    %606 = vmatpush1.bf16.xpose.msra.mxu0 0
    %607 = vmatprep.subr.bf16.mxu0 0
    %608 = vmatpush1.bf16.xpose.msra.mxu0 0
    %609 = vmatprep.subr.bf16.mxu0 0
    %610 = vmatpush1.bf16.xpose.msra.mxu0 0
    %611 = vmatprep.subr.bf16.mxu0 0
    %612 = vmatpush1.bf16.xpose.msra.mxu0 0
    %613 = vmatprep.subr.bf16.mxu0 0
    %614 = vmatpush1.bf16.xpose.msra.mxu0 0
    %615 = vmatprep.subr.bf16.mxu0 0
    %616 = vmatpush1.bf16.xpose.msra.mxu0 0
    %617 = vmatprep.subr.bf16.mxu0 0
    %618 = vmatpush1.bf16.xpose.msra.mxu0 0
    %619 = vmatprep.subr.bf16.mxu0 0
    %620 = vmatpush1.bf16.xpose.msra.mxu0 0
    %621 = vmatprep.subr.bf16.mxu0 0
    %622 = vmatpush1.bf16.xpose.msra.mxu0 0
    %623 = vmatprep.mubr.bf16.mxu0 0
    %624 = vmatmul.mubr.bf16.gmra.mrb[0].mxu0 %v586
    %v625 = vpop.f32.mrb[0].mxu0
    %v626 = vadd.f32 %v98, %v625
    %v627 = vpop.f32.mrb[0].mxu0
    %v628 = vpop.f32.mrb[0].mxu0
    %v629 = vadd.f32 %v99, %v628
    %v630 = vpop.f32.mrb[0].mxu0
    %631 = vdwg.mxu0
    %v632 = vsel %vm268, %v626, -inf
    %633 = vmax.xlane.f32.xlu0 %v632
    %v634 = vpop.xlane.xlu0 %633
    %v635 = vsel %vm268, %v629, -inf
    %636 = vmax.xlane.f32.xlu0 %v635
    %v637 = vpop.xlane.xlu0 %636
    %v638 = vsub.f32 %v626, %v634
    %v639 = vsub.f32 %v629, %v637
    %v640 = vmul.f32 %v638, 1.442695
    %v641 = vpow.pop %v640
    %v642 = vmul.f32 %v639, 1.442695
    %v643 = vpow.pop %v642
    %v644 = vsel %vm268, %v641, 0.0
    %645 = vadd.xlane.f32.xlu0 %v644
    %v646 = vpop.xlane.xlu0 %645
    %v647 = vsel %vm268, %v643, 0.0
    %648 = vadd.xlane.f32.xlu0 %v647
    %v649 = vpop.xlane.xlu0 %648
    %v650 = vrcp.pop %v646
    %v651 = vrcp.pop %v649
    %v652 = vmul.f32 %v641, %v650
    %v653 = vmul.f32 %v643, %v651
    %v654 = vpack.c.bf16 %v653, %v652
    %655 = vrot.lane.b32.xlu0 %v216, 40
    %v656 = vpop.permute.xlu0 %655
    %v659 = vsel %vm268, %v654, 0
    %661 = vmatprep.subr.bf16.mxu0 0
    %662 = vmatpush1.bf16.msra.mxu0 %v656
    %663 = vmatprep.subr.bf16.mxu0 0
    %664 = vmatpush1.bf16.msra.mxu0 0
    %665 = vmatprep.subr.bf16.mxu0 0
    %666 = vmatpush1.bf16.msra.mxu0 0
    %667 = vmatprep.subr.bf16.mxu0 0
    %668 = vmatpush1.bf16.msra.mxu0 0
    %669 = vmatprep.subr.bf16.mxu0 0
    %670 = vmatpush1.bf16.msra.mxu0 0
    %671 = vmatprep.subr.bf16.mxu0 0
    %672 = vmatpush1.bf16.msra.mxu0 0
    %673 = vmatprep.subr.bf16.mxu0 0
    %674 = vmatpush1.bf16.msra.mxu0 0
    %675 = vmatprep.subr.bf16.mxu0 0
    %676 = vmatpush1.bf16.msra.mxu0 0
    %677 = vmatprep.subr.bf16.mxu0 0
    %678 = vmatpush1.bf16.msra.mxu0 0
    %679 = vmatprep.subr.bf16.mxu0 0
    %680 = vmatpush1.bf16.msra.mxu0 0
    %681 = vmatprep.subr.bf16.mxu0 0
    %682 = vmatpush1.bf16.msra.mxu0 0
    %683 = vmatprep.subr.bf16.mxu0 0
    %684 = vmatpush1.bf16.msra.mxu0 0
    %685 = vmatprep.subr.bf16.mxu0 0
    %686 = vmatpush1.bf16.msra.mxu0 0
    %687 = vmatprep.subr.bf16.mxu0 0
    %688 = vmatpush1.bf16.msra.mxu0 0
    %689 = vmatprep.subr.bf16.mxu0 0
    %690 = vmatpush1.bf16.msra.mxu0 0
    %691 = vmatprep.subr.bf16.mxu0 0
    %692 = vmatpush1.bf16.msra.mxu0 0
    %693 = vmatprep.mubr.bf16.mxu0 0
    %694 = vmatmul.mubr.bf16.gmra.mrb[0].mxu0 %v659
    %v695 = vpop.f32.mrb[0].mxu0
    %v696 = vadd.f32 0.0, %v695
    %v697 = vpop.f32.mrb[0].mxu0
    %v698 = vpop.f32.mrb[0].mxu0
    %v699 = vadd.f32 0.0, %v698
    %v700 = vpop.f32.mrb[0].mxu0
    %701 = vdwg.mxu0
    %704 = vrot.lane.b32.xlu0 %v454, 8
    %v705 = vpop.permute.xlu0 %704
    %706 = vrot.lane.b32.xlu0 %v457, 8
    %v707 = vpop.permute.xlu0 %706
    %712 = vrot.lane.b32.xlu0 %v575, 16
    %v713 = vpop.permute.xlu0 %712
    %714 = vrot.lane.b32.xlu0 %v578, 16
    %v715 = vpop.permute.xlu0 %714
    %720 = vrot.lane.b32.xlu0 %v696, 24
    %v721 = vpop.permute.xlu0 %720
    %722 = vrot.lane.b32.xlu0 %v699, 24
    %v723 = vpop.permute.xlu0 %722
    %v726 = vsel %vm220, %v333, %v705
    %v727 = vsel %vm220, %v336, %v707
    %v728 = vsel %vm268, %v726, %v713
    %v729 = vsel %vm268, %v727, %v715
    %vm730 = vcmask 195584
    %v731 = vsel %vm730, %v728, %v721
    %v732 = vsel %vm730, %v729, %v723
    %v733 = vpack.c.bf16 %v732, %v731
    %v734 = vld [vmem:[%s8] sm:$0xf]
    %v735 = vld [vmem:[%s8 + $0x4] sm:$0xf]
    %v736 = vld [vmem:[%s8 + $0x8] sm:$0xf]
    %v737 = vld [vmem:[%s8 + $0xc] sm:$0xf]
    %v738 = vld [vmem:[%s9] sm:$0x1]
    %v740 = vlaneseq
    %v741 = vshrl.u32 %v740, 7
    %v742 = vsub.s32 0, %v741
    %v743 = vrot.slane %v738, %v742
    %v749 = vunpack.c.l.b16 %v734
    %v750 = vunpack.c.l.b16 %v735
    %v751 = vunpack.c.l.b16 %v736
    %v752 = vunpack.c.l.b16 %v737
    %v753 = vpack.c.b16 %v750, %v749
    %v754 = vpack.c.b16 %v752, %v751
    %v758 = vsel %vm104, %v733, 0
    %760 = vmatprep.subr.bf16.mxu0 0
    %761 = vmatpush1.bf16.msra.mxu0 %v753
    %762 = vmatprep.subr.bf16.mxu0 0
    %763 = vmatpush1.bf16.msra.mxu0 %v754
    %764 = vmatprep.subr.bf16.mxu0 0
    %765 = vmatpush1.bf16.msra.mxu0 0
    %766 = vmatprep.subr.bf16.mxu0 0
    %767 = vmatpush1.bf16.msra.mxu0 0
    %768 = vmatprep.subr.bf16.mxu0 0
    %769 = vmatpush1.bf16.msra.mxu0 0
    %770 = vmatprep.subr.bf16.mxu0 0
    %771 = vmatpush1.bf16.msra.mxu0 0
    %772 = vmatprep.subr.bf16.mxu0 0
    %773 = vmatpush1.bf16.msra.mxu0 0
    %774 = vmatprep.subr.bf16.mxu0 0
    %775 = vmatpush1.bf16.msra.mxu0 0
    %776 = vmatprep.subr.bf16.mxu0 0
    %777 = vmatpush1.bf16.msra.mxu0 0
    %778 = vmatprep.subr.bf16.mxu0 0
    %779 = vmatpush1.bf16.msra.mxu0 0
    %780 = vmatprep.subr.bf16.mxu0 0
    %781 = vmatpush1.bf16.msra.mxu0 0
    %782 = vmatprep.subr.bf16.mxu0 0
    %783 = vmatpush1.bf16.msra.mxu0 0
    %784 = vmatprep.subr.bf16.mxu0 0
    %785 = vmatpush1.bf16.msra.mxu0 0
    %786 = vmatprep.subr.bf16.mxu0 0
    %787 = vmatpush1.bf16.msra.mxu0 0
    %788 = vmatprep.subr.bf16.mxu0 0
    %789 = vmatpush1.bf16.msra.mxu0 0
    %790 = vmatprep.subr.bf16.mxu0 0
    %791 = vmatpush1.bf16.msra.mxu0 0
    %792 = vmatprep.mubr.bf16.mxu0 0
    %793 = vmatmul.mubr.bf16.gmra.mrb[0].mxu0 %v758
    %v794 = vpop.f32.mrb[0].mxu0
    %v795 = vadd.f32 %v743, %v794
    %v796 = vpop.f32.mrb[0].mxu0
    %v797 = vpop.f32.mrb[0].mxu0
    %v798 = vadd.f32 %v743, %v797
    %v799 = vpop.f32.mrb[0].mxu0
    %800 = vdwg.mxu0
    %v801 = vadd.f32 %v795, %v146
    %v802 = vadd.f32 %v798, %v147
    %v803 = vld [vmem:[%s10] sm:$0x1]
    %v804 = vld [vmem:[%s11] sm:$0x1]
    %v805 = vsel %vm104, %v801, 0.0
    %806 = vadd.xlane.f32.xlu0 %v805
    %v807 = vpop.xlane.xlu0 %806
    %v808 = vsel %vm104, %v802, 0.0
    %809 = vadd.xlane.f32.xlu0 %v808
    %v810 = vpop.xlane.xlu0 %809
    %v811 = vmul.f32 %v807, %v111
    %v812 = vmul.f32 %v810, %v111
    %v813 = vsub.f32 %v801, %v811
    %v814 = vsub.f32 %v802, %v812
    %v815 = vmul.f32 %v813, %v813
    %v816 = vmul.f32 %v814, %v814
    %v817 = vsel %vm104, %v815, 0.0
    %818 = vadd.xlane.f32.xlu0 %v817
    %v819 = vpop.xlane.xlu0 %818
    %v820 = vsel %vm104, %v816, 0.0
    %821 = vadd.xlane.f32.xlu0 %v820
    %v822 = vpop.xlane.xlu0 %821
    %v823 = vmul.f32 %v819, %v111
    %v824 = vmul.f32 %v822, %v111
    %v825 = vadd.f32 %v823, 1e-05
    %v826 = vadd.f32 %v824, 1e-05
    %v827 = vrsqrt.pop %v825
    %v828 = vrsqrt.pop %v826
    %v829 = vmul.f32 %v813, %v827
    %v830 = vmul.f32 %v814, %v828
    %v832 = vlaneseq
    %v833 = vshrl.u32 %v832, 7
    %v834 = vsub.s32 0, %v833
    %v835 = vrot.slane %v803, %v834
    %v837 = vmul.f32 %v829, %v835
    %v838 = vmul.f32 %v830, %v835
    %v840 = vlaneseq
    %v841 = vshrl.u32 %v840, 7
    %v842 = vsub.s32 0, %v841
    %v843 = vrot.slane %v804, %v842
    %v845 = vadd.f32 %v837, %v843
    %v846 = vadd.f32 %v838, %v843
    %v847 = vpack.c.bf16 %v846, %v845
    %v848 = vld [vmem:[%s12] sm:$0xf]
    %v849 = vld [vmem:[%s12 + $0x4] sm:$0xf]
    %v850 = vld [vmem:[%s12 + $0x8] sm:$0xf]
    %v851 = vld [vmem:[%s12 + $0xc] sm:$0xf]
    %v852 = vld [vmem:[%s13] sm:$0x1]
    %v854 = vlaneseq
    %v855 = vshrl.u32 %v854, 7
    %v856 = vsub.s32 0, %v855
    %v857 = vrot.slane %v852, %v856
    %v863 = vunpack.c.l.b16 %v848
    %v864 = vunpack.c.l.b16 %v849
    %v865 = vunpack.c.l.b16 %v850
    %v866 = vunpack.c.l.b16 %v851
    %v867 = vpack.c.b16 %v864, %v863
    %v868 = vpack.c.b16 %v866, %v865
    %v872 = vsel %vm104, %v847, 0
    %874 = vmatprep.subr.bf16.mxu0 0
    %875 = vmatpush1.bf16.msra.mxu0 %v867
    %876 = vmatprep.subr.bf16.mxu0 0
    %877 = vmatpush1.bf16.msra.mxu0 %v868
    %878 = vmatprep.subr.bf16.mxu0 0
    %879 = vmatpush1.bf16.msra.mxu0 0
    %880 = vmatprep.subr.bf16.mxu0 0
    %881 = vmatpush1.bf16.msra.mxu0 0
    %882 = vmatprep.subr.bf16.mxu0 0
    %883 = vmatpush1.bf16.msra.mxu0 0
    %884 = vmatprep.subr.bf16.mxu0 0
    %885 = vmatpush1.bf16.msra.mxu0 0
    %886 = vmatprep.subr.bf16.mxu0 0
    %887 = vmatpush1.bf16.msra.mxu0 0
    %888 = vmatprep.subr.bf16.mxu0 0
    %889 = vmatpush1.bf16.msra.mxu0 0
    %890 = vmatprep.subr.bf16.mxu0 0
    %891 = vmatpush1.bf16.msra.mxu0 0
    %892 = vmatprep.subr.bf16.mxu0 0
    %893 = vmatpush1.bf16.msra.mxu0 0
    %894 = vmatprep.subr.bf16.mxu0 0
    %895 = vmatpush1.bf16.msra.mxu0 0
    %896 = vmatprep.subr.bf16.mxu0 0
    %897 = vmatpush1.bf16.msra.mxu0 0
    %898 = vmatprep.subr.bf16.mxu0 0
    %899 = vmatpush1.bf16.msra.mxu0 0
    %900 = vmatprep.subr.bf16.mxu0 0
    %901 = vmatpush1.bf16.msra.mxu0 0
    %902 = vmatprep.subr.bf16.mxu0 0
    %903 = vmatpush1.bf16.msra.mxu0 0
    %904 = vmatprep.subr.bf16.mxu0 0
    %905 = vmatpush1.bf16.msra.mxu0 0
    %906 = vmatprep.mubr.bf16.mxu0 0
    %907 = vmatmul.mubr.bf16.gmra.mrb[0].mxu0 %v872
    %v908 = vpop.f32.mrb[0].mxu0
    %v909 = vadd.f32 %v857, %v908
    %v910 = vpop.f32.mrb[0].mxu0
    %v911 = vpop.f32.mrb[0].mxu0
    %v912 = vadd.f32 %v857, %v911
    %v913 = vpop.f32.mrb[0].mxu0
    %914 = vdwg.mxu0
    %v915 = vmul.f32 %v909, %v909
    %v916 = vmul.f32 %v912, %v912
    %v917 = vmul.f32 %v909, %v915
    %v918 = vmul.f32 %v912, %v916
    %v919 = vmul.f32 %v917, 0.044715
    %v920 = vmul.f32 %v918, 0.044715
    %v921 = vadd.f32 %v909, %v919
    %v922 = vadd.f32 %v912, %v920
    %v923 = vmul.f32 %v921, 0.7978846
    %v924 = vmul.f32 %v922, 0.7978846
    %v925 = vtanh.pop %v923
    %v926 = vtanh.pop %v924
    %v927 = vadd.f32 %v925, 1.0
    %v928 = vadd.f32 %v926, 1.0
    %v929 = vmul.f32 %v927, 0.5
    %v930 = vmul.f32 %v928, 0.5
    %v931 = vmul.f32 %v909, %v929
    %v932 = vmul.f32 %v912, %v930
    %v933 = vpack.c.bf16 %v932, %v931
    %v934 = vld [vmem:[%s14] sm:$0xf]
    %v935 = vld [vmem:[%s14 + $0x4] sm:$0xf]
    %v936 = vld [vmem:[%s14 + $0x8] sm:$0xf]
    %v937 = vld [vmem:[%s14 + $0xc] sm:$0xf]
    %v938 = vld [vmem:[%s14 + $0x10] sm:$0xf]
    %v939 = vld [vmem:[%s14 + $0x14] sm:$0xf]
    %v940 = vld [vmem:[%s14 + $0x18] sm:$0xf]
    %v941 = vld [vmem:[%s14 + $0x1c] sm:$0xf]
    %v942 = vld [vmem:[%s15] sm:$0x1]
    %v944 = vlaneseq
    %v945 = vshrl.u32 %v944, 7
    %v946 = vsub.s32 0, %v945
    %v947 = vrot.slane %v942, %v946
    %v957 = vunpack.c.l.b16 %v934
    %v958 = vunpack.c.l.b16 %v935
    %v959 = vunpack.c.l.b16 %v936
    %v960 = vunpack.c.l.b16 %v937
    %v961 = vunpack.c.l.b16 %v938
    %v962 = vunpack.c.l.b16 %v939
    %v963 = vunpack.c.l.b16 %v940
    %v964 = vunpack.c.l.b16 %v941
    %v965 = vpack.c.b16 %v958, %v957
    %v966 = vpack.c.b16 %v960, %v959
    %v967 = vpack.c.b16 %v962, %v961
    %v968 = vpack.c.b16 %v964, %v963
    %vm973 = vcmask 523264
    %v975 = vsel %vm973, %v933, 0
    %977 = vmatprep.subr.bf16.mxu0 0
    %978 = vmatpush1.bf16.msra.mxu0 %v965
    %979 = vmatprep.subr.bf16.mxu0 0
    %980 = vmatpush1.bf16.msra.mxu0 %v966
    %981 = vmatprep.subr.bf16.mxu0 0
    %982 = vmatpush1.bf16.msra.mxu0 %v967
    %983 = vmatprep.subr.bf16.mxu0 0
    %984 = vmatpush1.bf16.msra.mxu0 %v968
    %985 = vmatprep.subr.bf16.mxu0 0
    %986 = vmatpush1.bf16.msra.mxu0 0
    %987 = vmatprep.subr.bf16.mxu0 0
    %988 = vmatpush1.bf16.msra.mxu0 0
    %989 = vmatprep.subr.bf16.mxu0 0
    %990 = vmatpush1.bf16.msra.mxu0 0
    %991 = vmatprep.subr.bf16.mxu0 0
    %992 = vmatpush1.bf16.msra.mxu0 0
    %993 = vmatprep.subr.bf16.mxu0 0
    %994 = vmatpush1.bf16.msra.mxu0 0
    %995 = vmatprep.subr.bf16.mxu0 0
    %996 = vmatpush1.bf16.msra.mxu0 0
    %997 = vmatprep.subr.bf16.mxu0 0
    %998 = vmatpush1.bf16.msra.mxu0 0
    %999 = vmatprep.subr.bf16.mxu0 0
    %1000 = vmatpush1.bf16.msra.mxu0 0
    %1001 = vmatprep.subr.bf16.mxu0 0
    %1002 = vmatpush1.bf16.msra.mxu0 0
    %1003 = vmatprep.subr.bf16.mxu0 0
    %1004 = vmatpush1.bf16.msra.mxu0 0
    %1005 = vmatprep.subr.bf16.mxu0 0
    %1006 = vmatpush1.bf16.msra.mxu0 0
    %1007 = vmatprep.subr.bf16.mxu0 0
    %1008 = vmatpush1.bf16.msra.mxu0 0
    %1009 = vmatprep.mubr.bf16.mxu0 0
    %1010 = vmatmul.mubr.bf16.gmra.mrb[0].mxu0 %v975
    %v1011 = vpop.f32.mrb[0].mxu0
    %v1012 = vadd.f32 %v947, %v1011
    %v1013 = vpop.f32.mrb[0].mxu0
    %v1014 = vpop.f32.mrb[0].mxu0
    %v1015 = vadd.f32 %v947, %v1014
    %v1016 = vpop.f32.mrb[0].mxu0
    %1017 = vdwg.mxu0
    %v1018 = vadd.f32 %v1012, %v845
    %v1019 = vadd.f32 %v1015, %v846
    %v1020 = vld [vmem:[%s16] sm:$0x1]
    %v1021 = vld [vmem:[%s17] sm:$0x1]
    %v1022 = vsel %vm104, %v1018, 0.0
    %1023 = vadd.xlane.f32.xlu0 %v1022
    %v1024 = vpop.xlane.xlu0 %1023
    %v1025 = vsel %vm104, %v1019, 0.0
    %1026 = vadd.xlane.f32.xlu0 %v1025
    %v1027 = vpop.xlane.xlu0 %1026
    %v1028 = vmul.f32 %v1024, %v111
    %v1029 = vmul.f32 %v1027, %v111
    %v1030 = vsub.f32 %v1018, %v1028
    %v1031 = vsub.f32 %v1019, %v1029
    %v1032 = vmul.f32 %v1030, %v1030
    %v1033 = vmul.f32 %v1031, %v1031
    %v1034 = vsel %vm104, %v1032, 0.0
    %1035 = vadd.xlane.f32.xlu0 %v1034
    %v1036 = vpop.xlane.xlu0 %1035
    %v1037 = vsel %vm104, %v1033, 0.0
    %1038 = vadd.xlane.f32.xlu0 %v1037
    %v1039 = vpop.xlane.xlu0 %1038
    %v1040 = vmul.f32 %v1036, %v111
    %v1041 = vmul.f32 %v1039, %v111
    %v1042 = vadd.f32 %v1040, 1e-05
    %v1043 = vadd.f32 %v1041, 1e-05
    %v1044 = vrsqrt.pop %v1042
    %v1045 = vrsqrt.pop %v1043
    %v1046 = vmul.f32 %v1030, %v1044
    %v1047 = vmul.f32 %v1031, %v1045
    %v1049 = vlaneseq
    %v1050 = vshrl.u32 %v1049, 7
    %v1051 = vsub.s32 0, %v1050
    %v1052 = vrot.slane %v1020, %v1051
    %v1054 = vmul.f32 %v1046, %v1052
    %v1055 = vmul.f32 %v1047, %v1052
    %v1057 = vlaneseq
    %v1058 = vshrl.u32 %v1057, 7
    %v1059 = vsub.s32 0, %v1058
    %v1060 = vrot.slane %v1021, %v1059
    %v1062 = vadd.f32 %v1054, %v1060
    %v1063 = vadd.f32 %v1055, %v1060
    %v1064 = vpack.c.bf16 %v1063, %v1062
    %s1065 = scalar_lea.vmem %s6, 16
    %v1066 = vld [vmem:[%s1065] sm:$0xf]
    %v1067 = vld [vmem:[%s1065 + $0x4] sm:$0xf]
    %v1068 = vld [vmem:[%s1065 + $0x8] sm:$0xf]
    %v1069 = vld [vmem:[%s1065 + $0xc] sm:$0xf]
    %s1070 = scalar_lea.vmem %s7, 1
    %v1071 = vld [vmem:[%s1070] sm:$0x1]
    %v1073 = vlaneseq
    %v1074 = vshrl.u32 %v1073, 7
    %v1075 = vsub.s32 0, %v1074
    %v1076 = vrot.slane %v1071, %v1075
    %v1082 = vunpack.c.l.b16 %v1066
    %v1083 = vunpack.c.l.b16 %v1067
    %v1084 = vunpack.c.l.b16 %v1068
    %v1085 = vunpack.c.l.b16 %v1069
    %v1086 = vpack.c.b16 %v1083, %v1082
    %v1087 = vpack.c.b16 %v1085, %v1084
    %v1091 = vsel %vm104, %v1064, 0
    %1093 = vmatprep.subr.bf16.mxu0 0
    %1094 = vmatpush1.bf16.msra.mxu0 %v1086
    %1095 = vmatprep.subr.bf16.mxu0 0
    %1096 = vmatpush1.bf16.msra.mxu0 %v1087
    %1097 = vmatprep.subr.bf16.mxu0 0
    %1098 = vmatpush1.bf16.msra.mxu0 0
    %1099 = vmatprep.subr.bf16.mxu0 0
    %1100 = vmatpush1.bf16.msra.mxu0 0
    %1101 = vmatprep.subr.bf16.mxu0 0
    %1102 = vmatpush1.bf16.msra.mxu0 0
    %1103 = vmatprep.subr.bf16.mxu0 0
    %1104 = vmatpush1.bf16.msra.mxu0 0
    %1105 = vmatprep.subr.bf16.mxu0 0
    %1106 = vmatpush1.bf16.msra.mxu0 0
    %1107 = vmatprep.subr.bf16.mxu0 0
    %1108 = vmatpush1.bf16.msra.mxu0 0
    %1109 = vmatprep.subr.bf16.mxu0 0
    %1110 = vmatpush1.bf16.msra.mxu0 0
    %1111 = vmatprep.subr.bf16.mxu0 0
    %1112 = vmatpush1.bf16.msra.mxu0 0
    %1113 = vmatprep.subr.bf16.mxu0 0
    %1114 = vmatpush1.bf16.msra.mxu0 0
    %1115 = vmatprep.subr.bf16.mxu0 0
    %1116 = vmatpush1.bf16.msra.mxu0 0
    %1117 = vmatprep.subr.bf16.mxu0 0
    %1118 = vmatpush1.bf16.msra.mxu0 0
    %1119 = vmatprep.subr.bf16.mxu0 0
    %1120 = vmatpush1.bf16.msra.mxu0 0
    %1121 = vmatprep.subr.bf16.mxu0 0
    %1122 = vmatpush1.bf16.msra.mxu0 0
    %1123 = vmatprep.subr.bf16.mxu0 0
    %1124 = vmatpush1.bf16.msra.mxu0 0
    %1125 = vmatprep.mubr.bf16.mxu0 0
    %1126 = vmatmul.mubr.bf16.gmra.mrb[0].mxu0 %v1091
    %v1127 = vpop.f32.mrb[0].mxu0
    %v1128 = vadd.f32 %v1076, %v1127
    %v1129 = vpop.f32.mrb[0].mxu0
    %v1130 = vpop.f32.mrb[0].mxu0
    %v1131 = vadd.f32 %v1076, %v1130
    %v1132 = vpop.f32.mrb[0].mxu0
    %1133 = vdwg.mxu0
    %v1134 = vpack.c.bf16 %v1131, %v1128
    %1136 = vrot.lane.b32.xlu0 %v1134, 96
    %v1137 = vpop.permute.xlu0 %1136
    %v1139 = vsel %vm220, %v1134, 0
    %v1142 = vsel %vm220, %v1137, 0
    %1144 = vmatprep.subr.bf16.mxu0 0
    %1145 = vmatpush1.bf16.xpose.msra.mxu0 %v1142
    %1146 = vmatprep.subr.bf16.mxu0 0
    %1147 = vmatpush1.bf16.xpose.msra.mxu0 0
    %1148 = vmatprep.subr.bf16.mxu0 0
    %1149 = vmatpush1.bf16.xpose.msra.mxu0 0
    %1150 = vmatprep.subr.bf16.mxu0 0
    %1151 = vmatpush1.bf16.xpose.msra.mxu0 0
    %1152 = vmatprep.subr.bf16.mxu0 0
    %1153 = vmatpush1.bf16.xpose.msra.mxu0 0
    %1154 = vmatprep.subr.bf16.mxu0 0
    %1155 = vmatpush1.bf16.xpose.msra.mxu0 0
    %1156 = vmatprep.subr.bf16.mxu0 0
    %1157 = vmatpush1.bf16.xpose.msra.mxu0 0
    %1158 = vmatprep.subr.bf16.mxu0 0
    %1159 = vmatpush1.bf16.xpose.msra.mxu0 0
    %1160 = vmatprep.subr.bf16.mxu0 0
    %1161 = vmatpush1.bf16.xpose.msra.mxu0 0
    %1162 = vmatprep.subr.bf16.mxu0 0
    %1163 = vmatpush1.bf16.xpose.msra.mxu0 0
    %1164 = vmatprep.subr.bf16.mxu0 0
    %1165 = vmatpush1.bf16.xpose.msra.mxu0 0
    %1166 = vmatprep.subr.bf16.mxu0 0
    %1167 = vmatpush1.bf16.xpose.msra.mxu0 0
    %1168 = vmatprep.subr.bf16.mxu0 0
    %1169 = vmatpush1.bf16.xpose.msra.mxu0 0
    %1170 = vmatprep.subr.bf16.mxu0 0
    %1171 = vmatpush1.bf16.xpose.msra.mxu0 0
    %1172 = vmatprep.subr.bf16.mxu0 0
    %1173 = vmatpush1.bf16.xpose.msra.mxu0 0
    %1174 = vmatprep.subr.bf16.mxu0 0
    %1175 = vmatpush1.bf16.xpose.msra.mxu0 0
    %1176 = vmatprep.mubr.bf16.mxu0 0
    %1177 = vmatmul.mubr.bf16.gmra.mrb[0].mxu0 %v1139
    %v1178 = vpop.f32.mrb[0].mxu0
    %v1179 = vadd.f32 %v98, %v1178
    %v1180 = vpop.f32.mrb[0].mxu0
    %v1181 = vpop.f32.mrb[0].mxu0
    %v1182 = vadd.f32 %v99, %v1181
    %v1183 = vpop.f32.mrb[0].mxu0
    %1184 = vdwg.mxu0
    %v1185 = vsel %vm268, %v1179, -inf
    %1186 = vmax.xlane.f32.xlu0 %v1185
    %v1187 = vpop.xlane.xlu0 %1186
    %v1188 = vsel %vm268, %v1182, -inf
    %1189 = vmax.xlane.f32.xlu0 %v1188
    %v1190 = vpop.xlane.xlu0 %1189
    %v1191 = vsub.f32 %v1179, %v1187
    %v1192 = vsub.f32 %v1182, %v1190
    %v1193 = vmul.f32 %v1191, 1.442695
    %v1194 = vpow.pop %v1193
    %v1195 = vmul.f32 %v1192, 1.442695
    %v1196 = vpow.pop %v1195
    %v1197 = vsel %vm268, %v1194, 0.0
    %1198 = vadd.xlane.f32.xlu0 %v1197
    %v1199 = vpop.xlane.xlu0 %1198
    %v1200 = vsel %vm268, %v1196, 0.0
    %1201 = vadd.xlane.f32.xlu0 %v1200
    %v1202 = vpop.xlane.xlu0 %1201
    %v1203 = vrcp.pop %v1199
    %v1204 = vrcp.pop %v1202
    %v1205 = vmul.f32 %v1194, %v1203
    %v1206 = vmul.f32 %v1196, %v1204
    %v1207 = vpack.c.bf16 %v1206, %v1205
    %1208 = vrot.lane.b32.xlu0 %v1134, 64
    %v1209 = vpop.permute.xlu0 %1208
    %v1212 = vsel %vm268, %v1207, 0
    %1214 = vmatprep.subr.bf16.mxu0 0
    %1215 = vmatpush1.bf16.msra.mxu0 %v1209
    %1216 = vmatprep.subr.bf16.mxu0 0
    %1217 = vmatpush1.bf16.msra.mxu0 0
    %1218 = vmatprep.subr.bf16.mxu0 0
    %1219 = vmatpush1.bf16.msra.mxu0 0
    %1220 = vmatprep.subr.bf16.mxu0 0
    %1221 = vmatpush1.bf16.msra.mxu0 0
    %1222 = vmatprep.subr.bf16.mxu0 0
    %1223 = vmatpush1.bf16.msra.mxu0 0
    %1224 = vmatprep.subr.bf16.mxu0 0
    %1225 = vmatpush1.bf16.msra.mxu0 0
    %1226 = vmatprep.subr.bf16.mxu0 0
    %1227 = vmatpush1.bf16.msra.mxu0 0
    %1228 = vmatprep.subr.bf16.mxu0 0
    %1229 = vmatpush1.bf16.msra.mxu0 0
    %1230 = vmatprep.subr.bf16.mxu0 0
    %1231 = vmatpush1.bf16.msra.mxu0 0
    %1232 = vmatprep.subr.bf16.mxu0 0
    %1233 = vmatpush1.bf16.msra.mxu0 0
    %1234 = vmatprep.subr.bf16.mxu0 0
    %1235 = vmatpush1.bf16.msra.mxu0 0
    %1236 = vmatprep.subr.bf16.mxu0 0
    %1237 = vmatpush1.bf16.msra.mxu0 0
    %1238 = vmatprep.subr.bf16.mxu0 0
    %1239 = vmatpush1.bf16.msra.mxu0 0
    %1240 = vmatprep.subr.bf16.mxu0 0
    %1241 = vmatpush1.bf16.msra.mxu0 0
    %1242 = vmatprep.subr.bf16.mxu0 0
    %1243 = vmatpush1.bf16.msra.mxu0 0
    %1244 = vmatprep.subr.bf16.mxu0 0
    %1245 = vmatpush1.bf16.msra.mxu0 0
    %1246 = vmatprep.mubr.bf16.mxu0 0
    %1247 = vmatmul.mubr.bf16.gmra.mrb[0].mxu0 %v1212
    %v1248 = vpop.f32.mrb[0].mxu0
    %v1249 = vadd.f32 0.0, %v1248
    %v1250 = vpop.f32.mrb[0].mxu0
    %v1251 = vpop.f32.mrb[0].mxu0
    %v1252 = vadd.f32 0.0, %v1251
    %v1253 = vpop.f32.mrb[0].mxu0
    %1254 = vdwg.mxu0
    %1255 = vrot.lane.b32.xlu0 %v1134, 120
    %v1256 = vpop.permute.xlu0 %1255
    %1257 = vrot.lane.b32.xlu0 %v1134, 88
    %v1258 = vpop.permute.xlu0 %1257
    %v1260 = vsel %vm220, %v1256, 0
    %v1263 = vsel %vm220, %v1258, 0
    %1265 = vmatprep.subr.bf16.mxu0 0
    %1266 = vmatpush1.bf16.xpose.msra.mxu0 %v1263
    %1267 = vmatprep.subr.bf16.mxu0 0
    %1268 = vmatpush1.bf16.xpose.msra.mxu0 0
    %1269 = vmatprep.subr.bf16.mxu0 0
    %1270 = vmatpush1.bf16.xpose.msra.mxu0 0
    %1271 = vmatprep.subr.bf16.mxu0 0
    %1272 = vmatpush1.bf16.xpose.msra.mxu0 0
    %1273 = vmatprep.subr.bf16.mxu0 0
    %1274 = vmatpush1.bf16.xpose.msra.mxu0 0
    %1275 = vmatprep.subr.bf16.mxu0 0
    %1276 = vmatpush1.bf16.xpose.msra.mxu0 0
    %1277 = vmatprep.subr.bf16.mxu0 0
    %1278 = vmatpush1.bf16.xpose.msra.mxu0 0
    %1279 = vmatprep.subr.bf16.mxu0 0
    %1280 = vmatpush1.bf16.xpose.msra.mxu0 0
    %1281 = vmatprep.subr.bf16.mxu0 0
    %1282 = vmatpush1.bf16.xpose.msra.mxu0 0
    %1283 = vmatprep.subr.bf16.mxu0 0
    %1284 = vmatpush1.bf16.xpose.msra.mxu0 0
    %1285 = vmatprep.subr.bf16.mxu0 0
    %1286 = vmatpush1.bf16.xpose.msra.mxu0 0
    %1287 = vmatprep.subr.bf16.mxu0 0
    %1288 = vmatpush1.bf16.xpose.msra.mxu0 0
    %1289 = vmatprep.subr.bf16.mxu0 0
    %1290 = vmatpush1.bf16.xpose.msra.mxu0 0
    %1291 = vmatprep.subr.bf16.mxu0 0
    %1292 = vmatpush1.bf16.xpose.msra.mxu0 0
    %1293 = vmatprep.subr.bf16.mxu0 0
    %1294 = vmatpush1.bf16.xpose.msra.mxu0 0
    %1295 = vmatprep.subr.bf16.mxu0 0
    %1296 = vmatpush1.bf16.xpose.msra.mxu0 0
    %1297 = vmatprep.mubr.bf16.mxu0 0
    %1298 = vmatmul.mubr.bf16.gmra.mrb[0].mxu0 %v1260
    %v1299 = vpop.f32.mrb[0].mxu0
    %v1300 = vadd.f32 %v98, %v1299
    %v1301 = vpop.f32.mrb[0].mxu0
    %v1302 = vpop.f32.mrb[0].mxu0
    %v1303 = vadd.f32 %v99, %v1302
    %v1304 = vpop.f32.mrb[0].mxu0
    %1305 = vdwg.mxu0
    %v1306 = vsel %vm268, %v1300, -inf
    %1307 = vmax.xlane.f32.xlu0 %v1306
    %v1308 = vpop.xlane.xlu0 %1307
    %v1309 = vsel %vm268, %v1303, -inf
    %1310 = vmax.xlane.f32.xlu0 %v1309
    %v1311 = vpop.xlane.xlu0 %1310
    %v1312 = vsub.f32 %v1300, %v1308
    %v1313 = vsub.f32 %v1303, %v1311
    %v1314 = vmul.f32 %v1312, 1.442695
    %v1315 = vpow.pop %v1314
    %v1316 = vmul.f32 %v1313, 1.442695
    %v1317 = vpow.pop %v1316
    %v1318 = vsel %vm268, %v1315, 0.0
    %1319 = vadd.xlane.f32.xlu0 %v1318
    %v1320 = vpop.xlane.xlu0 %1319
    %v1321 = vsel %vm268, %v1317, 0.0
    %1322 = vadd.xlane.f32.xlu0 %v1321
    %v1323 = vpop.xlane.xlu0 %1322
    %v1324 = vrcp.pop %v1320
    %v1325 = vrcp.pop %v1323
    %v1326 = vmul.f32 %v1315, %v1324
    %v1327 = vmul.f32 %v1317, %v1325
    %v1328 = vpack.c.bf16 %v1327, %v1326
    %1329 = vrot.lane.b32.xlu0 %v1134, 56
    %v1330 = vpop.permute.xlu0 %1329
    %v1333 = vsel %vm268, %v1328, 0
    %1335 = vmatprep.subr.bf16.mxu0 0
    %1336 = vmatpush1.bf16.msra.mxu0 %v1330
    %1337 = vmatprep.subr.bf16.mxu0 0
    %1338 = vmatpush1.bf16.msra.mxu0 0
    %1339 = vmatprep.subr.bf16.mxu0 0
    %1340 = vmatpush1.bf16.msra.mxu0 0
    %1341 = vmatprep.subr.bf16.mxu0 0
    %1342 = vmatpush1.bf16.msra.mxu0 0
    %1343 = vmatprep.subr.bf16.mxu0 0
    %1344 = vmatpush1.bf16.msra.mxu0 0
    %1345 = vmatprep.subr.bf16.mxu0 0
    %1346 = vmatpush1.bf16.msra.mxu0 0
    %1347 = vmatprep.subr.bf16.mxu0 0
    %1348 = vmatpush1.bf16.msra.mxu0 0
    %1349 = vmatprep.subr.bf16.mxu0 0
    %1350 = vmatpush1.bf16.msra.mxu0 0
    %1351 = vmatprep.subr.bf16.mxu0 0
    %1352 = vmatpush1.bf16.msra.mxu0 0
    %1353 = vmatprep.subr.bf16.mxu0 0
    %1354 = vmatpush1.bf16.msra.mxu0 0
    %1355 = vmatprep.subr.bf16.mxu0 0
    %1356 = vmatpush1.bf16.msra.mxu0 0
    %1357 = vmatprep.subr.bf16.mxu0 0
    %1358 = vmatpush1.bf16.msra.mxu0 0
    %1359 = vmatprep.subr.bf16.mxu0 0
    %1360 = vmatpush1.bf16.msra.mxu0 0
    %1361 = vmatprep.subr.bf16.mxu0 0
    %1362 = vmatpush1.bf16.msra.mxu0 0
    %1363 = vmatprep.subr.bf16.mxu0 0
    %1364 = vmatpush1.bf16.msra.mxu0 0
    %1365 = vmatprep.subr.bf16.mxu0 0
    %1366 = vmatpush1.bf16.msra.mxu0 0
    %1367 = vmatprep.mubr.bf16.mxu0 0
    %1368 = vmatmul.mubr.bf16.gmra.mrb[0].mxu0 %v1333
    %v1369 = vpop.f32.mrb[0].mxu0
    %v1370 = vadd.f32 0.0, %v1369
    %v1371 = vpop.f32.mrb[0].mxu0
    %v1372 = vpop.f32.mrb[0].mxu0
    %v1373 = vadd.f32 0.0, %v1372
    %v1374 = vpop.f32.mrb[0].mxu0
    %1375 = vdwg.mxu0
    %1376 = vrot.lane.b32.xlu0 %v1134, 112
    %v1377 = vpop.permute.xlu0 %1376
    %1378 = vrot.lane.b32.xlu0 %v1134, 80
    %v1379 = vpop.permute.xlu0 %1378
    %v1381 = vsel %vm220, %v1377, 0
    %v1384 = vsel %vm220, %v1379, 0
    %1386 = vmatprep.subr.bf16.mxu0 0
    %1387 = vmatpush1.bf16.xpose.msra.mxu0 %v1384
    %1388 = vmatprep.subr.bf16.mxu0 0
    %1389 = vmatpush1.bf16.xpose.msra.mxu0 0
    %1390 = vmatprep.subr.bf16.mxu0 0
    %1391 = vmatpush1.bf16.xpose.msra.mxu0 0
    %1392 = vmatprep.subr.bf16.mxu0 0
    %1393 = vmatpush1.bf16.xpose.msra.mxu0 0
    %1394 = vmatprep.subr.bf16.mxu0 0
    %1395 = vmatpush1.bf16.xpose.msra.mxu0 0
    %1396 = vmatprep.subr.bf16.mxu0 0
    %1397 = vmatpush1.bf16.xpose.msra.mxu0 0
    %1398 = vmatprep.subr.bf16.mxu0 0
    %1399 = vmatpush1.bf16.xpose.msra.mxu0 0
    %1400 = vmatprep.subr.bf16.mxu0 0
    %1401 = vmatpush1.bf16.xpose.msra.mxu0 0
    %1402 = vmatprep.subr.bf16.mxu0 0
    %1403 = vmatpush1.bf16.xpose.msra.mxu0 0
    %1404 = vmatprep.subr.bf16.mxu0 0
    %1405 = vmatpush1.bf16.xpose.msra.mxu0 0
    %1406 = vmatprep.subr.bf16.mxu0 0
    %1407 = vmatpush1.bf16.xpose.msra.mxu0 0
    %1408 = vmatprep.subr.bf16.mxu0 0
    %1409 = vmatpush1.bf16.xpose.msra.mxu0 0
    %1410 = vmatprep.subr.bf16.mxu0 0
    %1411 = vmatpush1.bf16.xpose.msra.mxu0 0
    %1412 = vmatprep.subr.bf16.mxu0 0
    %1413 = vmatpush1.bf16.xpose.msra.mxu0 0
    %1414 = vmatprep.subr.bf16.mxu0 0
    %1415 = vmatpush1.bf16.xpose.msra.mxu0 0
    %1416 = vmatprep.subr.bf16.mxu0 0
    %1417 = vmatpush1.bf16.xpose.msra.mxu0 0
    %1418 = vmatprep.mubr.bf16.mxu0 0
    %1419 = vmatmul.mubr.bf16.gmra.mrb[0].mxu0 %v1381
    %v1420 = vpop.f32.mrb[0].mxu0
    %v1421 = vadd.f32 %v98, %v1420
    %v1422 = vpop.f32.mrb[0].mxu0
    %v1423 = vpop.f32.mrb[0].mxu0
    %v1424 = vadd.f32 %v99, %v1423
    %v1425 = vpop.f32.mrb[0].mxu0
    %1426 = vdwg.mxu0
    %v1427 = vsel %vm268, %v1421, -inf
    %1428 = vmax.xlane.f32.xlu0 %v1427
    %v1429 = vpop.xlane.xlu0 %1428
    %v1430 = vsel %vm268, %v1424, -inf
    %1431 = vmax.xlane.f32.xlu0 %v1430
    %v1432 = vpop.xlane.xlu0 %1431
    %v1433 = vsub.f32 %v1421, %v1429
    %v1434 = vsub.f32 %v1424, %v1432
    %v1435 = vmul.f32 %v1433, 1.442695
    %v1436 = vpow.pop %v1435
    %v1437 = vmul.f32 %v1434, 1.442695
    %v1438 = vpow.pop %v1437
    %v1439 = vsel %vm268, %v1436, 0.0
    %1440 = vadd.xlane.f32.xlu0 %v1439
    %v1441 = vpop.xlane.xlu0 %1440
    %v1442 = vsel %vm268, %v1438, 0.0
    %1443 = vadd.xlane.f32.xlu0 %v1442
    %v1444 = vpop.xlane.xlu0 %1443
    %v1445 = vrcp.pop %v1441
    %v1446 = vrcp.pop %v1444
    %v1447 = vmul.f32 %v1436, %v1445
    %v1448 = vmul.f32 %v1438, %v1446
    %v1449 = vpack.c.bf16 %v1448, %v1447
    %1450 = vrot.lane.b32.xlu0 %v1134, 48
    %v1451 = vpop.permute.xlu0 %1450
    %v1454 = vsel %vm268, %v1449, 0
    %1456 = vmatprep.subr.bf16.mxu0 0
    %1457 = vmatpush1.bf16.msra.mxu0 %v1451
    %1458 = vmatprep.subr.bf16.mxu0 0
    %1459 = vmatpush1.bf16.msra.mxu0 0
    %1460 = vmatprep.subr.bf16.mxu0 0
    %1461 = vmatpush1.bf16.msra.mxu0 0
    %1462 = vmatprep.subr.bf16.mxu0 0
    %1463 = vmatpush1.bf16.msra.mxu0 0
    %1464 = vmatprep.subr.bf16.mxu0 0
    %1465 = vmatpush1.bf16.msra.mxu0 0
    %1466 = vmatprep.subr.bf16.mxu0 0
    %1467 = vmatpush1.bf16.msra.mxu0 0
    %1468 = vmatprep.subr.bf16.mxu0 0
    %1469 = vmatpush1.bf16.msra.mxu0 0
    %1470 = vmatprep.subr.bf16.mxu0 0
    %1471 = vmatpush1.bf16.msra.mxu0 0
    %1472 = vmatprep.subr.bf16.mxu0 0
    %1473 = vmatpush1.bf16.msra.mxu0 0
    %1474 = vmatprep.subr.bf16.mxu0 0
    %1475 = vmatpush1.bf16.msra.mxu0 0
    %1476 = vmatprep.subr.bf16.mxu0 0
    %1477 = vmatpush1.bf16.msra.mxu0 0
    %1478 = vmatprep.subr.bf16.mxu0 0
    %1479 = vmatpush1.bf16.msra.mxu0 0
    %1480 = vmatprep.subr.bf16.mxu0 0
    %1481 = vmatpush1.bf16.msra.mxu0 0
    %1482 = vmatprep.subr.bf16.mxu0 0
    %1483 = vmatpush1.bf16.msra.mxu0 0
    %1484 = vmatprep.subr.bf16.mxu0 0
    %1485 = vmatpush1.bf16.msra.mxu0 0
    %1486 = vmatprep.subr.bf16.mxu0 0
    %1487 = vmatpush1.bf16.msra.mxu0 0
    %1488 = vmatprep.mubr.bf16.mxu0 0
    %1489 = vmatmul.mubr.bf16.gmra.mrb[0].mxu0 %v1454
    %v1490 = vpop.f32.mrb[0].mxu0
    %v1491 = vadd.f32 0.0, %v1490
    %v1492 = vpop.f32.mrb[0].mxu0
    %v1493 = vpop.f32.mrb[0].mxu0
    %v1494 = vadd.f32 0.0, %v1493
    %v1495 = vpop.f32.mrb[0].mxu0
    %1496 = vdwg.mxu0
    %1497 = vrot.lane.b32.xlu0 %v1134, 104
    %v1498 = vpop.permute.xlu0 %1497
    %1499 = vrot.lane.b32.xlu0 %v1134, 72
    %v1500 = vpop.permute.xlu0 %1499
    %v1502 = vsel %vm220, %v1498, 0
    %v1505 = vsel %vm220, %v1500, 0
    %1507 = vmatprep.subr.bf16.mxu0 0
    %1508 = vmatpush1.bf16.xpose.msra.mxu0 %v1505
    %1509 = vmatprep.subr.bf16.mxu0 0
    %1510 = vmatpush1.bf16.xpose.msra.mxu0 0
    %1511 = vmatprep.subr.bf16.mxu0 0
    %1512 = vmatpush1.bf16.xpose.msra.mxu0 0
    %1513 = vmatprep.subr.bf16.mxu0 0
    %1514 = vmatpush1.bf16.xpose.msra.mxu0 0
    %1515 = vmatprep.subr.bf16.mxu0 0
    %1516 = vmatpush1.bf16.xpose.msra.mxu0 0
    %1517 = vmatprep.subr.bf16.mxu0 0
    %1518 = vmatpush1.bf16.xpose.msra.mxu0 0
    %1519 = vmatprep.subr.bf16.mxu0 0
    %1520 = vmatpush1.bf16.xpose.msra.mxu0 0
    %1521 = vmatprep.subr.bf16.mxu0 0
    %1522 = vmatpush1.bf16.xpose.msra.mxu0 0
    %1523 = vmatprep.subr.bf16.mxu0 0
    %1524 = vmatpush1.bf16.xpose.msra.mxu0 0
    %1525 = vmatprep.subr.bf16.mxu0 0
    %1526 = vmatpush1.bf16.xpose.msra.mxu0 0
    %1527 = vmatprep.subr.bf16.mxu0 0
    %1528 = vmatpush1.bf16.xpose.msra.mxu0 0
    %1529 = vmatprep.subr.bf16.mxu0 0
    %1530 = vmatpush1.bf16.xpose.msra.mxu0 0
    %1531 = vmatprep.subr.bf16.mxu0 0
    %1532 = vmatpush1.bf16.xpose.msra.mxu0 0
    %1533 = vmatprep.subr.bf16.mxu0 0
    %1534 = vmatpush1.bf16.xpose.msra.mxu0 0
    %1535 = vmatprep.subr.bf16.mxu0 0
    %1536 = vmatpush1.bf16.xpose.msra.mxu0 0
    %1537 = vmatprep.subr.bf16.mxu0 0
    %1538 = vmatpush1.bf16.xpose.msra.mxu0 0
    %1539 = vmatprep.mubr.bf16.mxu0 0
    %1540 = vmatmul.mubr.bf16.gmra.mrb[0].mxu0 %v1502
    %v1541 = vpop.f32.mrb[0].mxu0
    %v1542 = vadd.f32 %v98, %v1541
    %v1543 = vpop.f32.mrb[0].mxu0
    %v1544 = vpop.f32.mrb[0].mxu0
    %v1545 = vadd.f32 %v99, %v1544
    %v1546 = vpop.f32.mrb[0].mxu0
    %1547 = vdwg.mxu0
    %v1548 = vsel %vm268, %v1542, -inf
    %1549 = vmax.xlane.f32.xlu0 %v1548
    %v1550 = vpop.xlane.xlu0 %1549
    %v1551 = vsel %vm268, %v1545, -inf
    %1552 = vmax.xlane.f32.xlu0 %v1551
    %v1553 = vpop.xlane.xlu0 %1552
    %v1554 = vsub.f32 %v1542, %v1550
    %v1555 = vsub.f32 %v1545, %v1553
    %v1556 = vmul.f32 %v1554, 1.442695
    %v1557 = vpow.pop %v1556
    %v1558 = vmul.f32 %v1555, 1.442695
    %v1559 = vpow.pop %v1558
    %v1560 = vsel %vm268, %v1557, 0.0
    %1561 = vadd.xlane.f32.xlu0 %v1560
    %v1562 = vpop.xlane.xlu0 %1561
    %v1563 = vsel %vm268, %v1559, 0.0
    %1564 = vadd.xlane.f32.xlu0 %v1563
    %v1565 = vpop.xlane.xlu0 %1564
    %v1566 = vrcp.pop %v1562
    %v1567 = vrcp.pop %v1565
    %v1568 = vmul.f32 %v1557, %v1566
    %v1569 = vmul.f32 %v1559, %v1567
    %v1570 = vpack.c.bf16 %v1569, %v1568
    %1571 = vrot.lane.b32.xlu0 %v1134, 40
    %v1572 = vpop.permute.xlu0 %1571
    %v1575 = vsel %vm268, %v1570, 0
    %1577 = vmatprep.subr.bf16.mxu0 0
    %1578 = vmatpush1.bf16.msra.mxu0 %v1572
    %1579 = vmatprep.subr.bf16.mxu0 0
    %1580 = vmatpush1.bf16.msra.mxu0 0
    %1581 = vmatprep.subr.bf16.mxu0 0
    %1582 = vmatpush1.bf16.msra.mxu0 0
    %1583 = vmatprep.subr.bf16.mxu0 0
    %1584 = vmatpush1.bf16.msra.mxu0 0
    %1585 = vmatprep.subr.bf16.mxu0 0
    %1586 = vmatpush1.bf16.msra.mxu0 0
    %1587 = vmatprep.subr.bf16.mxu0 0
    %1588 = vmatpush1.bf16.msra.mxu0 0
    %1589 = vmatprep.subr.bf16.mxu0 0
    %1590 = vmatpush1.bf16.msra.mxu0 0
    %1591 = vmatprep.subr.bf16.mxu0 0
    %1592 = vmatpush1.bf16.msra.mxu0 0
    %1593 = vmatprep.subr.bf16.mxu0 0
    %1594 = vmatpush1.bf16.msra.mxu0 0
    %1595 = vmatprep.subr.bf16.mxu0 0
    %1596 = vmatpush1.bf16.msra.mxu0 0
    %1597 = vmatprep.subr.bf16.mxu0 0
    %1598 = vmatpush1.bf16.msra.mxu0 0
    %1599 = vmatprep.subr.bf16.mxu0 0
    %1600 = vmatpush1.bf16.msra.mxu0 0
    %1601 = vmatprep.subr.bf16.mxu0 0
    %1602 = vmatpush1.bf16.msra.mxu0 0
    %1603 = vmatprep.subr.bf16.mxu0 0
    %1604 = vmatpush1.bf16.msra.mxu0 0
    %1605 = vmatprep.subr.bf16.mxu0 0
    %1606 = vmatpush1.bf16.msra.mxu0 0
    %1607 = vmatprep.subr.bf16.mxu0 0
    %1608 = vmatpush1.bf16.msra.mxu0 0
    %1609 = vmatprep.mubr.bf16.mxu0 0
    %1610 = vmatmul.mubr.bf16.gmra.mrb[0].mxu0 %v1575
    %v1611 = vpop.f32.mrb[0].mxu0
    %v1612 = vadd.f32 0.0, %v1611
    %v1613 = vpop.f32.mrb[0].mxu0
    %v1614 = vpop.f32.mrb[0].mxu0
    %v1615 = vadd.f32 0.0, %v1614
    %v1616 = vpop.f32.mrb[0].mxu0
    %1617 = vdwg.mxu0
    %1620 = vrot.lane.b32.xlu0 %v1370, 8
    %v1621 = vpop.permute.xlu0 %1620
    %1622 = vrot.lane.b32.xlu0 %v1373, 8
    %v1623 = vpop.permute.xlu0 %1622
    %1628 = vrot.lane.b32.xlu0 %v1491, 16
    %v1629 = vpop.permute.xlu0 %1628
    %1630 = vrot.lane.b32.xlu0 %v1494, 16
    %v1631 = vpop.permute.xlu0 %1630
    %1636 = vrot.lane.b32.xlu0 %v1612, 24
    %v1637 = vpop.permute.xlu0 %1636
    %1638 = vrot.lane.b32.xlu0 %v1615, 24
    %v1639 = vpop.permute.xlu0 %1638
    %v1642 = vsel %vm220, %v1249, %v1621
    %v1643 = vsel %vm220, %v1252, %v1623
    %v1644 = vsel %vm268, %v1642, %v1629
    %v1645 = vsel %vm268, %v1643, %v1631
    %v1646 = vsel %vm730, %v1644, %v1637
    %v1647 = vsel %vm730, %v1645, %v1639
    %v1648 = vpack.c.bf16 %v1647, %v1646
    %s1649 = scalar_lea.vmem %s8, 16
    %v1650 = vld [vmem:[%s1649] sm:$0xf]
    %v1651 = vld [vmem:[%s1649 + $0x4] sm:$0xf]
    %v1652 = vld [vmem:[%s1649 + $0x8] sm:$0xf]
    %v1653 = vld [vmem:[%s1649 + $0xc] sm:$0xf]
    %s1654 = scalar_lea.vmem %s9, 1
    %v1655 = vld [vmem:[%s1654] sm:$0x1]
    %v1657 = vlaneseq
    %v1658 = vshrl.u32 %v1657, 7
    %v1659 = vsub.s32 0, %v1658
    %v1660 = vrot.slane %v1655, %v1659
    %v1666 = vunpack.c.l.b16 %v1650
    %v1667 = vunpack.c.l.b16 %v1651
    %v1668 = vunpack.c.l.b16 %v1652
    %v1669 = vunpack.c.l.b16 %v1653
    %v1670 = vpack.c.b16 %v1667, %v1666
    %v1671 = vpack.c.b16 %v1669, %v1668
    %v1675 = vsel %vm104, %v1648, 0
    %1677 = vmatprep.subr.bf16.mxu0 0
    %1678 = vmatpush1.bf16.msra.mxu0 %v1670
    %1679 = vmatprep.subr.bf16.mxu0 0
    %1680 = vmatpush1.bf16.msra.mxu0 %v1671
    %1681 = vmatprep.subr.bf16.mxu0 0
    %1682 = vmatpush1.bf16.msra.mxu0 0
    %1683 = vmatprep.subr.bf16.mxu0 0
    %1684 = vmatpush1.bf16.msra.mxu0 0
    %1685 = vmatprep.subr.bf16.mxu0 0
    %1686 = vmatpush1.bf16.msra.mxu0 0
    %1687 = vmatprep.subr.bf16.mxu0 0
    %1688 = vmatpush1.bf16.msra.mxu0 0
    %1689 = vmatprep.subr.bf16.mxu0 0
    %1690 = vmatpush1.bf16.msra.mxu0 0
    %1691 = vmatprep.subr.bf16.mxu0 0
    %1692 = vmatpush1.bf16.msra.mxu0 0
    %1693 = vmatprep.subr.bf16.mxu0 0
    %1694 = vmatpush1.bf16.msra.mxu0 0
    %1695 = vmatprep.subr.bf16.mxu0 0
    %1696 = vmatpush1.bf16.msra.mxu0 0
    %1697 = vmatprep.subr.bf16.mxu0 0
    %1698 = vmatpush1.bf16.msra.mxu0 0
    %1699 = vmatprep.subr.bf16.mxu0 0
    %1700 = vmatpush1.bf16.msra.mxu0 0
    %1701 = vmatprep.subr.bf16.mxu0 0
    %1702 = vmatpush1.bf16.msra.mxu0 0
    %1703 = vmatprep.subr.bf16.mxu0 0
    %1704 = vmatpush1.bf16.msra.mxu0 0
    %1705 = vmatprep.subr.bf16.mxu0 0
    %1706 = vmatpush1.bf16.msra.mxu0 0
    %1707 = vmatprep.subr.bf16.mxu0 0
    %1708 = vmatpush1.bf16.msra.mxu0 0
    %1709 = vmatprep.mubr.bf16.mxu0 0
    %1710 = vmatmul.mubr.bf16.gmra.mrb[0].mxu0 %v1675
    %v1711 = vpop.f32.mrb[0].mxu0
    %v1712 = vadd.f32 %v1660, %v1711
    %v1713 = vpop.f32.mrb[0].mxu0
    %v1714 = vpop.f32.mrb[0].mxu0
    %v1715 = vadd.f32 %v1660, %v1714
    %v1716 = vpop.f32.mrb[0].mxu0
    %1717 = vdwg.mxu0
    %v1718 = vadd.f32 %v1712, %v1062
    %v1719 = vadd.f32 %v1715, %v1063
    %s1720 = scalar_lea.vmem %s10, 1
    %v1721 = vld [vmem:[%s1720] sm:$0x1]
    %s1722 = scalar_lea.vmem %s11, 1
    %v1723 = vld [vmem:[%s1722] sm:$0x1]
    %v1724 = vsel %vm104, %v1718, 0.0
    %1725 = vadd.xlane.f32.xlu0 %v1724
    %v1726 = vpop.xlane.xlu0 %1725
    %v1727 = vsel %vm104, %v1719, 0.0
    %1728 = vadd.xlane.f32.xlu0 %v1727
    %v1729 = vpop.xlane.xlu0 %1728
    %v1730 = vmul.f32 %v1726, %v111
    %v1731 = vmul.f32 %v1729, %v111
    %v1732 = vsub.f32 %v1718, %v1730
    %v1733 = vsub.f32 %v1719, %v1731
    %v1734 = vmul.f32 %v1732, %v1732
    %v1735 = vmul.f32 %v1733, %v1733
    %v1736 = vsel %vm104, %v1734, 0.0
    %1737 = vadd.xlane.f32.xlu0 %v1736
    %v1738 = vpop.xlane.xlu0 %1737
    %v1739 = vsel %vm104, %v1735, 0.0
    %1740 = vadd.xlane.f32.xlu0 %v1739
    %v1741 = vpop.xlane.xlu0 %1740
    %v1742 = vmul.f32 %v1738, %v111
    %v1743 = vmul.f32 %v1741, %v111
    %v1744 = vadd.f32 %v1742, 1e-05
    %v1745 = vadd.f32 %v1743, 1e-05
    %v1746 = vrsqrt.pop %v1744
    %v1747 = vrsqrt.pop %v1745
    %v1748 = vmul.f32 %v1732, %v1746
    %v1749 = vmul.f32 %v1733, %v1747
    %v1751 = vlaneseq
    %v1752 = vshrl.u32 %v1751, 7
    %v1753 = vsub.s32 0, %v1752
    %v1754 = vrot.slane %v1721, %v1753
    %v1756 = vmul.f32 %v1748, %v1754
    %v1757 = vmul.f32 %v1749, %v1754
    %v1759 = vlaneseq
    %v1760 = vshrl.u32 %v1759, 7
    %v1761 = vsub.s32 0, %v1760
    %v1762 = vrot.slane %v1723, %v1761
    %v1764 = vadd.f32 %v1756, %v1762
    %v1765 = vadd.f32 %v1757, %v1762
    %v1766 = vpack.c.bf16 %v1765, %v1764
    %s1767 = scalar_lea.vmem %s12, 16
    %v1768 = vld [vmem:[%s1767] sm:$0xf]
    %v1769 = vld [vmem:[%s1767 + $0x4] sm:$0xf]
    %v1770 = vld [vmem:[%s1767 + $0x8] sm:$0xf]
    %v1771 = vld [vmem:[%s1767 + $0xc] sm:$0xf]
    %s1772 = scalar_lea.vmem %s13, 1
    %v1773 = vld [vmem:[%s1772] sm:$0x1]
    %v1775 = vlaneseq
    %v1776 = vshrl.u32 %v1775, 7
    %v1777 = vsub.s32 0, %v1776
    %v1778 = vrot.slane %v1773, %v1777
    %v1784 = vunpack.c.l.b16 %v1768
    %v1785 = vunpack.c.l.b16 %v1769
    %v1786 = vunpack.c.l.b16 %v1770
    %v1787 = vunpack.c.l.b16 %v1771
    %v1788 = vpack.c.b16 %v1785, %v1784
    %v1789 = vpack.c.b16 %v1787, %v1786
    %v1793 = vsel %vm104, %v1766, 0
    %1795 = vmatprep.subr.bf16.mxu0 0
    %1796 = vmatpush1.bf16.msra.mxu0 %v1788
    %1797 = vmatprep.subr.bf16.mxu0 0
    %1798 = vmatpush1.bf16.msra.mxu0 %v1789
    %1799 = vmatprep.subr.bf16.mxu0 0
    %1800 = vmatpush1.bf16.msra.mxu0 0
    %1801 = vmatprep.subr.bf16.mxu0 0
    %1802 = vmatpush1.bf16.msra.mxu0 0
    %1803 = vmatprep.subr.bf16.mxu0 0
    %1804 = vmatpush1.bf16.msra.mxu0 0
    %1805 = vmatprep.subr.bf16.mxu0 0
    %1806 = vmatpush1.bf16.msra.mxu0 0
    %1807 = vmatprep.subr.bf16.mxu0 0
    %1808 = vmatpush1.bf16.msra.mxu0 0
    %1809 = vmatprep.subr.bf16.mxu0 0
    %1810 = vmatpush1.bf16.msra.mxu0 0
    %1811 = vmatprep.subr.bf16.mxu0 0
    %1812 = vmatpush1.bf16.msra.mxu0 0
    %1813 = vmatprep.subr.bf16.mxu0 0
    %1814 = vmatpush1.bf16.msra.mxu0 0
    %1815 = vmatprep.subr.bf16.mxu0 0
    %1816 = vmatpush1.bf16.msra.mxu0 0
    %1817 = vmatprep.subr.bf16.mxu0 0
    %1818 = vmatpush1.bf16.msra.mxu0 0
    %1819 = vmatprep.subr.bf16.mxu0 0
    %1820 = vmatpush1.bf16.msra.mxu0 0
    %1821 = vmatprep.subr.bf16.mxu0 0
    %1822 = vmatpush1.bf16.msra.mxu0 0
    %1823 = vmatprep.subr.bf16.mxu0 0
    %1824 = vmatpush1.bf16.msra.mxu0 0
    %1825 = vmatprep.subr.bf16.mxu0 0
    %1826 = vmatpush1.bf16.msra.mxu0 0
    %1827 = vmatprep.mubr.bf16.mxu0 0
    %1828 = vmatmul.mubr.bf16.gmra.mrb[0].mxu0 %v1793
    %v1829 = vpop.f32.mrb[0].mxu0
    %v1830 = vadd.f32 %v1778, %v1829
    %v1831 = vpop.f32.mrb[0].mxu0
    %v1832 = vpop.f32.mrb[0].mxu0
    %v1833 = vadd.f32 %v1778, %v1832
    %v1834 = vpop.f32.mrb[0].mxu0
    %1835 = vdwg.mxu0
    %v1836 = vmul.f32 %v1830, %v1830
    %v1837 = vmul.f32 %v1833, %v1833
    %v1838 = vmul.f32 %v1830, %v1836
    %v1839 = vmul.f32 %v1833, %v1837
    %v1840 = vmul.f32 %v1838, 0.044715
    %v1841 = vmul.f32 %v1839, 0.044715
    %v1842 = vadd.f32 %v1830, %v1840
    %v1843 = vadd.f32 %v1833, %v1841
    %v1844 = vmul.f32 %v1842, 0.7978846
    %v1845 = vmul.f32 %v1843, 0.7978846
    %v1846 = vtanh.pop %v1844
    %v1847 = vtanh.pop %v1845
    %v1848 = vadd.f32 %v1846, 1.0
    %v1849 = vadd.f32 %v1847, 1.0
    %v1850 = vmul.f32 %v1848, 0.5
    %v1851 = vmul.f32 %v1849, 0.5
    %v1852 = vmul.f32 %v1830, %v1850
    %v1853 = vmul.f32 %v1833, %v1851
    %v1854 = vpack.c.bf16 %v1853, %v1852
    %s1855 = scalar_lea.vmem %s14, 32
    %v1856 = vld [vmem:[%s1855] sm:$0xf]
    %v1857 = vld [vmem:[%s1855 + $0x4] sm:$0xf]
    %v1858 = vld [vmem:[%s1855 + $0x8] sm:$0xf]
    %v1859 = vld [vmem:[%s1855 + $0xc] sm:$0xf]
    %v1860 = vld [vmem:[%s1855 + $0x10] sm:$0xf]
    %v1861 = vld [vmem:[%s1855 + $0x14] sm:$0xf]
    %v1862 = vld [vmem:[%s1855 + $0x18] sm:$0xf]
    %v1863 = vld [vmem:[%s1855 + $0x1c] sm:$0xf]
    %s1864 = scalar_lea.vmem %s15, 1
    %v1865 = vld [vmem:[%s1864] sm:$0x1]
    %v1867 = vlaneseq
    %v1868 = vshrl.u32 %v1867, 7
    %v1869 = vsub.s32 0, %v1868
    %v1870 = vrot.slane %v1865, %v1869
    %v1880 = vunpack.c.l.b16 %v1856
    %v1881 = vunpack.c.l.b16 %v1857
    %v1882 = vunpack.c.l.b16 %v1858
    %v1883 = vunpack.c.l.b16 %v1859
    %v1884 = vunpack.c.l.b16 %v1860
    %v1885 = vunpack.c.l.b16 %v1861
    %v1886 = vunpack.c.l.b16 %v1862
    %v1887 = vunpack.c.l.b16 %v1863
    %v1888 = vpack.c.b16 %v1881, %v1880
    %v1889 = vpack.c.b16 %v1883, %v1882
    %v1890 = vpack.c.b16 %v1885, %v1884
    %v1891 = vpack.c.b16 %v1887, %v1886
    %v1897 = vsel %vm973, %v1854, 0
    %1899 = vmatprep.subr.bf16.mxu0 0
    %1900 = vmatpush1.bf16.msra.mxu0 %v1888
    %1901 = vmatprep.subr.bf16.mxu0 0
    %1902 = vmatpush1.bf16.msra.mxu0 %v1889
    %1903 = vmatprep.subr.bf16.mxu0 0
    %1904 = vmatpush1.bf16.msra.mxu0 %v1890
    %1905 = vmatprep.subr.bf16.mxu0 0
    %1906 = vmatpush1.bf16.msra.mxu0 %v1891
    %1907 = vmatprep.subr.bf16.mxu0 0
    %1908 = vmatpush1.bf16.msra.mxu0 0
    %1909 = vmatprep.subr.bf16.mxu0 0
    %1910 = vmatpush1.bf16.msra.mxu0 0
    %1911 = vmatprep.subr.bf16.mxu0 0
    %1912 = vmatpush1.bf16.msra.mxu0 0
    %1913 = vmatprep.subr.bf16.mxu0 0
    %1914 = vmatpush1.bf16.msra.mxu0 0
    %1915 = vmatprep.subr.bf16.mxu0 0
    %1916 = vmatpush1.bf16.msra.mxu0 0
    %1917 = vmatprep.subr.bf16.mxu0 0
    %1918 = vmatpush1.bf16.msra.mxu0 0
    %1919 = vmatprep.subr.bf16.mxu0 0
    %1920 = vmatpush1.bf16.msra.mxu0 0
    %1921 = vmatprep.subr.bf16.mxu0 0
    %1922 = vmatpush1.bf16.msra.mxu0 0
    %1923 = vmatprep.subr.bf16.mxu0 0
    %1924 = vmatpush1.bf16.msra.mxu0 0
    %1925 = vmatprep.subr.bf16.mxu0 0
    %1926 = vmatpush1.bf16.msra.mxu0 0
    %1927 = vmatprep.subr.bf16.mxu0 0
    %1928 = vmatpush1.bf16.msra.mxu0 0
    %1929 = vmatprep.subr.bf16.mxu0 0
    %1930 = vmatpush1.bf16.msra.mxu0 0
    %1931 = vmatprep.mubr.bf16.mxu0 0
    %1932 = vmatmul.mubr.bf16.gmra.mrb[0].mxu0 %v1897
    %v1933 = vpop.f32.mrb[0].mxu0
    %v1934 = vadd.f32 %v1870, %v1933
    %v1935 = vpop.f32.mrb[0].mxu0
    %v1936 = vpop.f32.mrb[0].mxu0
    %v1937 = vadd.f32 %v1870, %v1936
    %v1938 = vpop.f32.mrb[0].mxu0
    %1939 = vdwg.mxu0
    %v1940 = vadd.f32 %v1934, %v1764
    %v1941 = vadd.f32 %v1937, %v1765
    %s1942 = scalar_lea.vmem %s16, 1
    %v1943 = vld [vmem:[%s1942] sm:$0x1]
    %s1944 = scalar_lea.vmem %s17, 1
    %v1945 = vld [vmem:[%s1944] sm:$0x1]
    %v1946 = vsel %vm104, %v1940, 0.0
    %1947 = vadd.xlane.f32.xlu0 %v1946
    %v1948 = vpop.xlane.xlu0 %1947
    %v1949 = vsel %vm104, %v1941, 0.0
    %1950 = vadd.xlane.f32.xlu0 %v1949
    %v1951 = vpop.xlane.xlu0 %1950
    %v1952 = vmul.f32 %v1948, %v111
    %v1953 = vmul.f32 %v1951, %v111
    %v1954 = vsub.f32 %v1940, %v1952
    %v1955 = vsub.f32 %v1941, %v1953
    %v1956 = vmul.f32 %v1954, %v1954
    %v1957 = vmul.f32 %v1955, %v1955
    %v1958 = vsel %vm104, %v1956, 0.0
    %1959 = vadd.xlane.f32.xlu0 %v1958
    %v1960 = vpop.xlane.xlu0 %1959
    %v1961 = vsel %vm104, %v1957, 0.0
    %1962 = vadd.xlane.f32.xlu0 %v1961
    %v1963 = vpop.xlane.xlu0 %1962
    %v1964 = vmul.f32 %v1960, %v111
    %v1965 = vmul.f32 %v1963, %v111
    %v1966 = vadd.f32 %v1964, 1e-05
    %v1967 = vadd.f32 %v1965, 1e-05
    %v1968 = vrsqrt.pop %v1966
    %v1969 = vrsqrt.pop %v1967
    %v1970 = vmul.f32 %v1954, %v1968
    %v1971 = vmul.f32 %v1955, %v1969
    %v1973 = vlaneseq
    %v1974 = vshrl.u32 %v1973, 7
    %v1975 = vsub.s32 0, %v1974
    %v1976 = vrot.slane %v1943, %v1975
    %v1978 = vmul.f32 %v1970, %v1976
    %v1979 = vmul.f32 %v1971, %v1976
    %v1981 = vlaneseq
    %v1982 = vshrl.u32 %v1981, 7
    %v1983 = vsub.s32 0, %v1982
    %v1984 = vrot.slane %v1945, %v1983
    %v1986 = vadd.f32 %v1978, %v1984
    %v1987 = vadd.f32 %v1979, %v1984
    %v1989 = vrot.slane %v1987, 7
    %vm1991 = vcmask 1040384
    %v1992 = vsel %vm1991, %v1986, %v1989
    %v1993 = vpack.c.bf16 %v1992, %v1992
    %v1994 = vld [vmem:[%s18] sm:$0xf]
    %v1995 = vld [vmem:[%s18 + $0x4] sm:$0xf]
    %v1996 = vld [vmem:[%s18 + $0x8] sm:$0xf]
    %v1997 = vld [vmem:[%s18 + $0xc] sm:$0xf]
    %v1998 = vld [vmem:[%s19] sm:$0x1]
    %v2000 = vlaneseq
    %v2001 = vshrl.u32 %v2000, 7
    %v2002 = vsub.s32 0, %v2001
    %v2003 = vrot.slane %v1998, %v2002
    %v2009 = vunpack.c.l.b16 %v1994
    %v2010 = vunpack.c.l.b16 %v1995
    %v2011 = vunpack.c.l.b16 %v1996
    %v2012 = vunpack.c.l.b16 %v1997
    %v2013 = vpack.c.b16 %v2010, %v2009
    %v2014 = vpack.c.b16 %v2012, %v2011
    %v2018 = vsel %vm104, %v1993, 0
    %2020 = vmatprep.subr.bf16.mxu0 0
    %2021 = vmatpush1.bf16.msra.mxu0 %v2013
    %2022 = vmatprep.subr.bf16.mxu0 0
    %2023 = vmatpush1.bf16.msra.mxu0 %v2014
    %2024 = vmatprep.subr.bf16.mxu0 0
    %2025 = vmatpush1.bf16.msra.mxu0 0
    %2026 = vmatprep.subr.bf16.mxu0 0
    %2027 = vmatpush1.bf16.msra.mxu0 0
    %2028 = vmatprep.subr.bf16.mxu0 0
    %2029 = vmatpush1.bf16.msra.mxu0 0
    %2030 = vmatprep.subr.bf16.mxu0 0
    %2031 = vmatpush1.bf16.msra.mxu0 0
    %2032 = vmatprep.subr.bf16.mxu0 0
    %2033 = vmatpush1.bf16.msra.mxu0 0
    %2034 = vmatprep.subr.bf16.mxu0 0
    %2035 = vmatpush1.bf16.msra.mxu0 0
    %2036 = vmatprep.subr.bf16.mxu0 0
    %2037 = vmatpush1.bf16.msra.mxu0 0
    %2038 = vmatprep.subr.bf16.mxu0 0
    %2039 = vmatpush1.bf16.msra.mxu0 0
    %2040 = vmatprep.subr.bf16.mxu0 0
    %2041 = vmatpush1.bf16.msra.mxu0 0
    %2042 = vmatprep.subr.bf16.mxu0 0
    %2043 = vmatpush1.bf16.msra.mxu0 0
    %2044 = vmatprep.subr.bf16.mxu0 0
    %2045 = vmatpush1.bf16.msra.mxu0 0
    %2046 = vmatprep.subr.bf16.mxu0 0
    %2047 = vmatpush1.bf16.msra.mxu0 0
    %2048 = vmatprep.subr.bf16.mxu0 0
    %2049 = vmatpush1.bf16.msra.mxu0 0
    %2050 = vmatprep.subr.bf16.mxu0 0
    %2051 = vmatpush1.bf16.msra.mxu0 0
    %2052 = vmatprep.mubr.bf16.mxu0 0
    %2053 = vmatmul.mubr.bf16.gmra.mrb[0].mxu0 %v2018
    %v2054 = vpop.f32.mrb[0].mxu0
    %v2055 = vadd.f32 %v2003, %v2054
    %v2056 = vpop.f32.mrb[0].mxu0
    %v2057 = vpop.f32.mrb[0].mxu0
    %v2058 = vpop.f32.mrb[0].mxu0
    %2059 = vdwg.mxu0
    %2060 = vst [vmem:[#allocation2] sm:$0x3] %v2055
    // Predicated region
    $region82: #{phobert_classifier_forward.1} parent=1 // pred_check
      _
    $region83: #{phobert_classifier_forward.1} parent=1 // pred_check_branch
      %2062 = sbr.rel (0) target = $region85
    $region84: #{phobert_classifier_forward.1} parent=1 // pred_region
      %s2064 = ssub.s32 32, 32
      %2065 = vsyncadd [#allocation3], %s2064
      %s2067 = sshll.u32 [#allocation2], 4
      %s2068 = int_to_ptr.vmem [resolvable:$true] %s2067
      %2070 = dma.vmem_to_hbm [thread:$0]  %s2068, 32, %s20, [#allocation3]
    $region85: #{phobert_classifier_forward.1} parent=1 // pred_fallthru
      _
    // Predicated region
    $region86: #{phobert_classifier_forward.1} parent=1 // pred_check
      _
    $region87: #{phobert_classifier_forward.1} parent=1 // pred_check_branch
      %2072 = sbr.rel (0) target = $region89
    $region88: #{phobert_classifier_forward.1} parent=1 // pred_region
      %2073 = dma.done [#allocation3], 32
    $region89: #{phobert_classifier_forward.1} parent=1 // pred_fallthru
      _
    %2074 = vsyncpa [#allocation3], 1

</llo_original>
